<compile_context>
chip_gen: v6e
topology: v6e:2x2x1
jax: 0.10.0
libtpu: 0.0.40
codegen_flags: <defaults>
</compile_context>

<pallas_src>
from functools import partial

import jax
import jax.numpy as jnp
from jax.experimental import pallas as pl
from jax.experimental.pallas import tpu as pltpu


def deepfake_detect_kernel(x_ref, w_enc_ref, b_enc_ref,
                           w1_ref, b1_ref, w2_ref, b2_ref,
                           out_ref, acc_ref, *, p_total, tile_p):
    """One spatial tile per grid step.

    x_ref     : (B, C, TILE_P)  bf16   streamed input tile (P lane-dense)
    w_enc_ref : (F, C)          f32    encoder stand-in 1x1-conv weight (transposed)
    b_enc_ref : (F, 1)          f32    encoder stand-in bias
    w1/b1/w2/b2                 f32    classifier params
    out_ref   : (B, 1)          f32    logits (written on last grid step only)
    acc_ref   : (B, F)          f32    running spatial sum of ReLU features
    """
    p = pl.program_id(0)
    n_tiles = pl.num_programs(0)

    @pl.when(p == 0)
    def _init():
        acc_ref[...] = jnp.zeros_like(acc_ref)

    # TODO(synk): the real module uses a timm EfficientNet encoder
    # (forward_features); it has no single-kernel Pallas equivalent and is
    # replaced by a deterministic 1x1-conv (channel mix) + ReLU stand-in that
    # produces a feature map of the same rank/layout.
    x = x_ref[...].astype(jnp.float32)          # (B, C, T)  upcast for VPU math
    w = w_enc_ref[...]                          # (F, C)     resident weights
    _, c_dim, _ = x.shape

    # Channel mix as a sum of C outer products on the VPU (C=4 is far too small
    # a contraction to be worth the MXU).  feat: (B, F, T), F on sublane,
    # spatial on lane.
    feat = x[:, 0:1, :] * w[:, 0:1][None, :, :]
    for c in range(1, c_dim):
        feat = feat + x[:, c:c + 1, :] * w[:, c:c + 1][None, :, :]

    contrib = jnp.maximum(feat + b_enc_ref[...][None, :, :], 0.0)   # (B, F, T)

    # Mask padded spatial positions of a partial last tile (static check: only
    # emit the mask when P is not a multiple of TILE_P).
    if p_total % tile_p != 0:
        pos = p * tile_p + jax.lax.broadcasted_iota(jnp.int32, (1, 1, tile_p), 2)
        contrib = jnp.where(pos < p_total, contrib, 0.0)

    # Single dense accumulator update per tile (2 rows x F lanes).
    acc_ref[...] += jnp.sum(contrib, axis=-1)                        # (B, F)

    @pl.when(p == n_tiles - 1)
    def _finalize():
        # AdaptiveAvgPool2d((1,1)) + flatten(1): divide by the TRUE spatial size.
        pooled = acc_ref[...] * (1.0 / float(p_total))               # (B, F)
        # classifier: Linear -> Dropout(0.5) [eval: identity] -> ReLU -> Linear
        h = jnp.dot(pooled, w1_ref[...],
                    preferred_element_type=jnp.float32) + b1_ref[...]
        h = jnp.maximum(h, 0.0)
        out = jnp.dot(h, w2_ref[...],
                      preferred_element_type=jnp.float32) + b2_ref[...]
        out_ref[...] = out


def deepfake_detect_forward(x_nchw, params, *, tile_p=512):
    """x_nchw: (B, C, H, W) float32 -> (B, 1) float32 logits."""
    B, C, H, W = x_nchw.shape
    P = H * W
    F, H1 = params["w1"].shape

    # Lane-aligned spatial tile: multiple of 128, or the full extent.
    if P % 128 == 0:
        tile_p = max(128, min(tile_p, P))
        tile_p -= tile_p % 128
    else:
        tile_p = P                       # single (full) tile along P
    n_tiles = pl.cdiv(P, tile_p)

    # NCHW -> (B, C, P): pure reshape (no HBM transpose pass); stream as bf16.
    x_bcp = x_nchw.reshape(B, C, P).astype(jnp.bfloat16)

    # Present weights with F on the sublane axis so the per-channel column
    # slices broadcast cheaply inside the kernel.
    w_enc_t = params["w_enc"].T          # (F, C)
    b_enc_c = params["b_enc"].reshape(F, 1)
    w1, b1, w2, b2 = params["w1"], params["b1"], params["w2"], params["b2"]

    flops = 2 * B * P * C * F + 2 * B * F * H1 + 2 * B * H1
    bytes_accessed = (x_bcp.size * 2
                      + (w_enc_t.size + b_enc_c.size
                         + w1.size + b1.size + w2.size + b2.size) * 4
                      + B * 4)

    out = pl.pallas_call(
        partial(deepfake_detect_kernel, p_total=P, tile_p=tile_p),
        out_shape=jax.ShapeDtypeStruct((B, 1), jnp.float32),
        grid_spec=pltpu.PrefetchScalarGridSpec(
            num_scalar_prefetch=0,
            grid=(n_tiles,),
            in_specs=[
                pl.BlockSpec((B, C, tile_p), lambda p: (0, 0, p)),   # x tiles
                pl.BlockSpec((F, C), lambda p: (0, 0)),              # w_enc^T
                pl.BlockSpec((F, 1), lambda p: (0, 0)),              # b_enc
                pl.BlockSpec((F, H1), lambda p: (0, 0)),             # w1
                pl.BlockSpec((1, H1), lambda p: (0, 0)),             # b1
                pl.BlockSpec((H1, 1), lambda p: (0, 0)),             # w2
                pl.BlockSpec((1, 1), lambda p: (0, 0)),              # b2
            ],
            out_specs=pl.BlockSpec((B, 1), lambda p: (0, 0)),
            scratch_shapes=[pltpu.VMEM((B, F), jnp.float32)],        # (B, F) acc
        ),
        compiler_params=pltpu.CompilerParams(
            dimension_semantics=("arbitrary",),          # reduction over P tiles
            vmem_limit_bytes=32 * 1024 * 1024,           # safe on v5e/v6e/v7x
        ),
        cost_estimate=pl.CostEstimate(
            flops=flops, transcendentals=0, bytes_accessed=bytes_accessed),
    )(x_bcp, w_enc_t, b_enc_c, w1, b1, w2, b2)
    return out


def make_params(key, in_channels, feat_dim):
    hidden = int(feat_dim * 0.1)                       # matches int(F * 0.1)
    k = jax.random.split(key, 6)
    scale = 0.05
    return {
        # stand-in encoder (1x1 conv over channels)
        "w_enc": scale * jax.random.normal(k[0], (in_channels, feat_dim), jnp.float32),
        "b_enc": scale * jax.random.normal(k[1], (1, feat_dim), jnp.float32),
        # classifier Linear(F, H1)
        "w1": scale * jax.random.normal(k[2], (feat_dim, hidden), jnp.float32),
        "b1": scale * jax.random.normal(k[3], (1, hidden), jnp.float32),
        # classifier Linear(H1, 1)
        "w2": scale * jax.random.normal(k[4], (hidden, 1), jnp.float32),
        "b2": scale * jax.random.normal(k[5], (1, 1), jnp.float32),
    }


if __name__ == "__main__":
    key = jax.random.PRNGKey(0)
    k_x, k_p = jax.random.split(key)

    # Small shapes consistent with the forward pass:
    #   batch=2, in-channels=4, spatial=16x16 (P=256), encoder feature dim F=128.
    B, C, H, W = 2, 4, 16, 16
    FEAT_DIM = 128

    x = jax.random.normal(k_x, (B, C, H, W), jnp.float32)
    params = make_params(k_p, C, FEAT_DIM)

    # tile_p=128 -> grid of 2 spatial tiles, exercising the streaming accumulator.
    logits = deepfake_detect_forward(x, params, tile_p=128)
    jax.block_until_ready(logits)

    assert logits.shape == (B, 1) and logits.dtype == jnp.float32
    print("KERNEL_OK")
</pallas_src>

<mosaic_0001>
module attributes {stable_mosaic.version = 11 : i64} {
  func.func @deepfake_detect_kernel(%arg0: i32, %arg1: memref<2x4x128xbf16, #tpu.memory_space<vmem>>, %arg2: memref<128x4xf32, #tpu.memory_space<vmem>>, %arg3: memref<128x1xf32, #tpu.memory_space<vmem>>, %arg4: memref<128x12xf32, #tpu.memory_space<vmem>>, %arg5: memref<1x12xf32, #tpu.memory_space<vmem>>, %arg6: memref<12x1xf32, #tpu.memory_space<vmem>>, %arg7: memref<1x1xf32, #tpu.memory_space<vmem>>, %arg8: memref<2x1xf32, #tpu.memory_space<vmem>>, %arg9: memref<2x128xf32, #tpu.memory_space<vmem>>) attributes {dimension_semantics = [#tpu.dimension_semantics<arbitrary>], iteration_bounds = array<i64: 2>, scalar_prefetch = 0 : i64, scratch_operands = 1 : i64, tpu.core_type = #tpu.core_type<tc>, window_params = [{transform_indices = @transform_0, window_bounds = array<i64: 2, 4, 128>}, {pipeline_mode = #tpu.pipeline_mode<synchronous>, transform_indices = @transform_1, window_bounds = array<i64: 128, 4>}, {pipeline_mode = #tpu.pipeline_mode<synchronous>, transform_indices = @transform_2, window_bounds = array<i64: 128, 1>}, {pipeline_mode = #tpu.pipeline_mode<synchronous>, transform_indices = @transform_3, window_bounds = array<i64: 128, 12>}, {pipeline_mode = #tpu.pipeline_mode<synchronous>, transform_indices = @transform_4, window_bounds = array<i64: 1, 12>}, {pipeline_mode = #tpu.pipeline_mode<synchronous>, transform_indices = @transform_5, window_bounds = array<i64: 12, 1>}, {pipeline_mode = #tpu.pipeline_mode<synchronous>, transform_indices = @transform_6, window_bounds = array<i64: 1, 1>}, {pipeline_mode = #tpu.pipeline_mode<synchronous>, transform_indices = @transform_7, window_bounds = array<i64: 2, 1>}]} {
    %c0_i32 = arith.constant 0 : i32
    %0 = arith.cmpi eq, %arg0, %c0_i32 : i32
    %1 = arith.extui %0 : i1 to i32
    %c0_i32_0 = arith.constant 0 : i32
    %2 = arith.cmpi ne, %1, %c0_i32_0 : i32
    scf.if %2 {
      %cst_13 = arith.constant 0.000000e+00 : f32
      %46 = vector.broadcast %cst_13 : f32 to vector<2x128xf32>
      %c0_14 = arith.constant 0 : index
      %c0_15 = arith.constant 0 : index
      %47 = vector.load %arg9[%c0_14, %c0_15] : memref<2x128xf32, #tpu.memory_space<vmem>>, vector<2x128xf32>
      tpu.vector_store %arg9[%c0_14, %c0_15], %46 {strides = array<i32>} : memref<2x128xf32, #tpu.memory_space<vmem>>, vector<2x128xf32>,
    } else {
    }
    %c0 = arith.constant 0 : index
    %c0_1 = arith.constant 0 : index
    %c0_2 = arith.constant 0 : index
    %3 = vector.load %arg1[%c0, %c0_1, %c0_2] : memref<2x4x128xbf16, #tpu.memory_space<vmem>>, vector<2x4x128xbf16>
    %4 = arith.extf %3 : vector<2x4x128xbf16> to vector<2x4x128xf32>
    %c0_3 = arith.constant 0 : index
    %c0_4 = arith.constant 0 : index
    %5 = vector.load %arg2[%c0_3, %c0_4] : memref<128x4xf32, #tpu.memory_space<vmem>>, vector<128x4xf32>
    %6 = vector.extract_strided_slice %4 {offsets = [0, 0, 0], sizes = [2, 1, 128], strides = [1, 1, 1]} : vector<2x4x128xf32> to vector<2x1x128xf32>
    %7 = vector.extract_strided_slice %5 {offsets = [0, 0], sizes = [128, 1], strides = [1, 1]} : vector<128x4xf32> to vector<128x1xf32>
    %8 = vector.shape_cast %7 : vector<128x1xf32> to vector<1x128x1xf32>
    %9 = vector.broadcast %6 : vector<2x1x128xf32> to vector<2x128x128xf32>
    %10 = vector.broadcast %8 : vector<1x128x1xf32> to vector<2x128x128xf32>
    %11 = arith.mulf %9, %10 : vector<2x128x128xf32>
    %12 = vector.extract_strided_slice %4 {offsets = [0, 1, 0], sizes = [2, 1, 128], strides = [1, 1, 1]} : vector<2x4x128xf32> to vector<2x1x128xf32>
    %13 = vector.extract_strided_slice %5 {offsets = [0, 1], sizes = [128, 1], strides = [1, 1]} : vector<128x4xf32> to vector<128x1xf32>
    %14 = vector.shape_cast %13 : vector<128x1xf32> to vector<1x128x1xf32>
    %15 = vector.broadcast %12 : vector<2x1x128xf32> to vector<2x128x128xf32>
    %16 = vector.broadcast %14 : vector<1x128x1xf32> to vector<2x128x128xf32>
    %17 = arith.mulf %15, %16 : vector<2x128x128xf32>
    %18 = arith.addf %11, %17 : vector<2x128x128xf32>
    %19 = vector.extract_strided_slice %4 {offsets = [0, 2, 0], sizes = [2, 1, 128], strides = [1, 1, 1]} : vector<2x4x128xf32> to vector<2x1x128xf32>
    %20 = vector.extract_strided_slice %5 {offsets = [0, 2], sizes = [128, 1], strides = [1, 1]} : vector<128x4xf32> to vector<128x1xf32>
    %21 = vector.shape_cast %20 : vector<128x1xf32> to vector<1x128x1xf32>
    %22 = vector.broadcast %19 : vector<2x1x128xf32> to vector<2x128x128xf32>
    %23 = vector.broadcast %21 : vector<1x128x1xf32> to vector<2x128x128xf32>
    %24 = arith.mulf %22, %23 : vector<2x128x128xf32>
    %25 = arith.addf %18, %24 : vector<2x128x128xf32>
    %26 = vector.extract_strided_slice %4 {offsets = [0, 3, 0], sizes = [2, 1, 128], strides = [1, 1, 1]} : vector<2x4x128xf32> to vector<2x1x128xf32>
    %27 = vector.extract_strided_slice %5 {offsets = [0, 3], sizes = [128, 1], strides = [1, 1]} : vector<128x4xf32> to vector<128x1xf32>
    %28 = vector.shape_cast %27 : vector<128x1xf32> to vector<1x128x1xf32>
    %29 = vector.broadcast %26 : vector<2x1x128xf32> to vector<2x128x128xf32>
    %30 = vector.broadcast %28 : vector<1x128x1xf32> to vector<2x128x128xf32>
    %31 = arith.mulf %29, %30 : vector<2x128x128xf32>
    %32 = arith.addf %25, %31 : vector<2x128x128xf32>
    %c0_5 = arith.constant 0 : index
    %c0_6 = arith.constant 0 : index
    %33 = vector.load %arg3[%c0_5, %c0_6] : memref<128x1xf32, #tpu.memory_space<vmem>>, vector<128x1xf32>
    %34 = vector.shape_cast %33 : vector<128x1xf32> to vector<1x128x1xf32>
    %35 = vector.broadcast %34 : vector<1x128x1xf32> to vector<2x128x128xf32>
    %36 = arith.addf %32, %35 : vector<2x128x128xf32>
    %cst = arith.constant 0.000000e+00 : f32
    %37 = vector.broadcast %cst : f32 to vector<2x128x128xf32>
    %38 = arith.maximumf %36, %37 : vector<2x128x128xf32>
    %c0_7 = arith.constant 0 : index
    %c0_8 = arith.constant 0 : index
    %39 = vector.load %arg9[%c0_7, %c0_8] : memref<2x128xf32, #tpu.memory_space<vmem>>, vector<2x128xf32>
    %cst_9 = arith.constant dense<0.000000e+00> : vector<2x128xf32>
    %40 = vector.multi_reduction <add>, %38, %cst_9 [2] : vector<2x128x128xf32> to vector<2x128xf32>
    %41 = arith.addf %39, %40 : vector<2x128xf32>
    %c0_10 = arith.constant 0 : index
    %c0_11 = arith.constant 0 : index
    %42 = vector.load %arg9[%c0_10, %c0_11] : memref<2x128xf32, #tpu.memory_space<vmem>>, vector<2x128xf32>
    tpu.vector_store %arg9[%c0_10, %c0_11], %41 {strides = array<i32>} : memref<2x128xf32, #tpu.memory_space<vmem>>, vector<2x128xf32>,
    %c1_i32 = arith.constant 1 : i32
    %43 = arith.cmpi eq, %arg0, %c1_i32 : i32
    %44 = arith.extui %43 : i1 to i32
    %c0_i32_12 = arith.constant 0 : i32
    %45 = arith.cmpi ne, %44, %c0_i32_12 : i32
    scf.if %45 {
      %c0_13 = arith.constant 0 : index
      %c0_14 = arith.constant 0 : index
      %46 = vector.load %arg9[%c0_13, %c0_14] : memref<2x128xf32, #tpu.memory_space<vmem>>, vector<2x128xf32>
      %cst_15 = arith.constant 3.906250e-03 : f32
      %47 = vector.broadcast %cst_15 : f32 to vector<2x128xf32>
      %48 = arith.mulf %46, %47 : vector<2x128xf32>
      %c0_16 = arith.constant 0 : index
      %c0_17 = arith.constant 0 : index
      %49 = vector.load %arg4[%c0_16, %c0_17] : memref<128x12xf32, #tpu.memory_space<vmem>>, vector<128x12xf32>
      %cst_18 = arith.constant dense<0.000000e+00> : vector<2x12xf32>
      %50 = tpu.matmul %48, %49, %cst_18 {dimension_numbers = #tpu.dot_dimension_numbers<[1], [0], [0], [1], [0, 0, 1, 1], [], []>} : vector<2x128xf32>, vector<128x12xf32>, vector<2x12xf32> -> vector<2x12xf32>
      %c0_19 = arith.constant 0 : index
      %c0_20 = arith.constant 0 : index
      %51 = vector.load %arg5[%c0_19, %c0_20] : memref<1x12xf32, #tpu.memory_space<vmem>>, vector<1x12xf32>
      %52 = vector.broadcast %51 : vector<1x12xf32> to vector<2x12xf32>
      %53 = arith.addf %50, %52 : vector<2x12xf32>
      %cst_21 = arith.constant 0.000000e+00 : f32
      %54 = vector.broadcast %cst_21 : f32 to vector<2x12xf32>
      %55 = arith.maximumf %53, %54 : vector<2x12xf32>
      %c0_22 = arith.constant 0 : index
      %c0_23 = arith.constant 0 : index
      %56 = vector.load %arg6[%c0_22, %c0_23] : memref<12x1xf32, #tpu.memory_space<vmem>>, vector<12x1xf32>
      %cst_24 = arith.constant dense<0.000000e+00> : vector<2x1xf32>
      %57 = tpu.matmul %55, %56, %cst_24 {dimension_numbers = #tpu.dot_dimension_numbers<[1], [0], [0], [1], [0, 0, 1, 1], [], []>} : vector<2x12xf32>, vector<12x1xf32>, vector<2x1xf32> -> vector<2x1xf32>
      %c0_25 = arith.constant 0 : index
      %c0_26 = arith.constant 0 : index
      %58 = vector.load %arg7[%c0_25, %c0_26] : memref<1x1xf32, #tpu.memory_space<vmem>>, vector<1x1xf32>
      %59 = vector.broadcast %58 : vector<1x1xf32> to vector<2x1xf32>
      %60 = arith.addf %57, %59 : vector<2x1xf32>
      %c0_27 = arith.constant 0 : index
      %c0_28 = arith.constant 0 : index
      %61 = vector.load %arg8[%c0_27, %c0_28] : memref<2x1xf32, #tpu.memory_space<vmem>>, vector<2x1xf32>
      tpu.vector_store %arg8[%c0_27, %c0_28], %60 {strides = array<i32>} : memref<2x1xf32, #tpu.memory_space<vmem>>, vector<2x1xf32>,
    } else {
    }
    return
  }
  func.func @transform_0(%arg0: i32) -> (i32, i32, i32) {
    %c0_i32 = arith.constant 0 : i32
    %c0_i32_0 = arith.constant 0 : i32
    %c0_i32_1 = arith.constant 0 : i32
    return %c0_i32, %c0_i32_0, %arg0 : i32, i32, i32
  }
  func.func @transform_1(%arg0: i32) -> (i32, i32) {
    %c0_i32 = arith.constant 0 : i32
    %c0_i32_0 = arith.constant 0 : i32
    %c0_i32_1 = arith.constant 0 : i32
    return %c0_i32, %c0_i32_0 : i32, i32
  }
  func.func @transform_2(%arg0: i32) -> (i32, i32) {
    %c0_i32 = arith.constant 0 : i32
    %c0_i32_0 = arith.constant 0 : i32
    %c0_i32_1 = arith.constant 0 : i32
    return %c0_i32, %c0_i32_0 : i32, i32
  }
  func.func @transform_3(%arg0: i32) -> (i32, i32) {
    %c0_i32 = arith.constant 0 : i32
    %c0_i32_0 = arith.constant 0 : i32
    %c0_i32_1 = arith.constant 0 : i32
    return %c0_i32, %c0_i32_0 : i32, i32
  }
  func.func @transform_4(%arg0: i32) -> (i32, i32) {
    %c0_i32 = arith.constant 0 : i32
    %c0_i32_0 = arith.constant 0 : i32
    %c0_i32_1 = arith.constant 0 : i32
    return %c0_i32, %c0_i32_0 : i32, i32
  }
  func.func @transform_5(%arg0: i32) -> (i32, i32) {
    %c0_i32 = arith.constant 0 : i32
    %c0_i32_0 = arith.constant 0 : i32
    %c0_i32_1 = arith.constant 0 : i32
    return %c0_i32, %c0_i32_0 : i32, i32
  }
  func.func @transform_6(%arg0: i32) -> (i32, i32) {
    %c0_i32 = arith.constant 0 : i32
    %c0_i32_0 = arith.constant 0 : i32
    %c0_i32_1 = arith.constant 0 : i32
    return %c0_i32, %c0_i32_0 : i32, i32
  }
  func.func @transform_7(%arg0: i32) -> (i32, i32) {
    %c0_i32 = arith.constant 0 : i32
    %c0_i32_0 = arith.constant 0 : i32
    %c0_i32_1 = arith.constant 0 : i32
    return %c0_i32, %c0_i32_0 : i32, i32
  }
}

</mosaic_0001>

<llo_original>
// kernel: tpu_custom_call.1
$region0: #{tpu_custom_call.1}
  #allocation0 [shape = 'u32[]', space=smem, size = 0x4, offset = 0x4, fixed_abs, tag = 'smem constant byte address 0x4 - core index']
  #allocation1 [shape = 'u32[144,128]{1,0:T(1,128)}', space=vmem, size = 0x12000, scoped, tag = 'internal scratch']
  #allocation2 [shape = 'f32[2,128]{1,0:T(2,128)}', space=vmem, size = 0x400, scoped, tag = 'scratch operand']
  #allocation3 [shape = 'f32[1,1]{1,0:T(1,128)S(1)}', space=vmem, size = 0x200, scoped, tag = 'scoped memory for tpu_custom_call.1']
  %s0 = inlined_call_operand.vmem [shape: bf16[2,4,256], index: 0, kind: input, shape index: {}]
  %s1 = inlined_call_operand.vmem [shape: f32[128,4], index: 1, kind: input, shape index: {}]
  %s2 = inlined_call_operand.vmem [shape: f32[128,1], index: 2, kind: input, shape index: {}]
  %s3 = inlined_call_operand.vmem [shape: f32[128,12], index: 3, kind: input, shape index: {}]
  %s4 = inlined_call_operand.vmem [shape: f32[1,12], index: 4, kind: input, shape index: {}]
  %s5 = inlined_call_operand.vmem [shape: f32[12,1], index: 5, kind: input, shape index: {}]
  %s6 = inlined_call_operand.<no memory space> [shape: f32[1,1], index: 6, kind: input, shape index: {}]
  %s7 = inlined_call_operand.vmem [shape: f32[2,1], index: 7, kind: output, shape index: {}]
  %s8 = sld [smem:[#allocation0]]
  $region103: #{tpu_custom_call.1} parent=0
    _
  %s10 = ssub.s32 1, %s8
  %s11 = scalar_select 0, %s10, %s8
  %v12 = vstv %s6
  %13 = vst [vmem:[#allocation3] sm:$0x1] %v12
  $region1: #{tpu_custom_call.1} parent=0
    #allocation4 [shape = 'u8[4096]{0}', space=vmem, size = 0x1000, scoped, tag = 'input window, operand 0']
    loop: start=0, step=1, limit=4
    $region2: #{tpu_custom_call.1} parent=1 // loop_pre_header
      _
    $region3: #{tpu_custom_call.1} parent=1 // loop_header
      %s15 = sphi 0, %s19
      %p16 = scmp.ge.s32.totalorder %s15, 4
      %s25 = sphi 0, %s27
      %s28 = sphi 0, %s25
      %s29 = sphi 0, %s28
      %s45 = sphi 0, %s29
      %s49 = sphi 0, %s49
      %s51 = sphi 0, %s49
      %s52 = sphi 0, %s51
      %s66 = sphi 0, %s52
      %s70 = sphi 0, %s70
      %s72 = sphi 0, %s70
      %s73 = sphi 0, %s72
      %s87 = sphi 0, %s73
      %s91 = sphi 0, %s91
      %s93 = sphi 0, %s91
      %s94 = sphi 0, %s93
      %s108 = sphi 0, %s94
      %s112 = sphi 0, %s112
      %s114 = sphi 0, %s112
      %s115 = sphi 0, %s114
      %s129 = sphi 0, %s115
      %s133 = sphi 0, %s133
      %s135 = sphi 0, %s133
      %s136 = sphi 0, %s135
      %s150 = sphi 0, %s136
      %s154 = sphi 0, %s154
      %s156 = sphi 0, %s154
      %s157 = sphi 0, %s156
      %s171 = sphi 0, %s157
      %s175 = sphi 0, %s175
      %s177 = sphi 0, %s175
      %s178 = sphi 0, %s177
      %s192 = sphi 0, %s178
    $region4: #{tpu_custom_call.1} parent=1 // loop_header_branch
      %18 = sbr.rel (%p16) target = $region8
    $region5: #{tpu_custom_call.1} parent=1 // loop_body
      %s20 = ssub.s32 %s15, 1
      %s21 = ssub.s32 %s15, 2
      %s22 = sadd.s32 %s15, 1
      %s23 = ssub.s32 %s15, %s22
      %p24 = scmp.eq.s32.totalorder %s23, 0
      %s26 = sadd.s32 %s25, 1
      %s27 = scalar_select %p24, %s25, %s26
      %p30 = pneg %p24
      %p31 = scmp.eq.s32.totalorder %s15, 1
      %p32 = por %p30, %p31
      %p33 = scmp.ne.s32.totalorder %s25, %s28
      %p34 = scmp.eq.s32.totalorder %s15, 0
      %p35 = por %p33, %p34
      %p36 = scmp.ne.s32.totalorder %s25, %s28
      %p37 = scmp.eq.s32.totalorder %s20, 1
      %p38 = por %p36, %p37
      %p39 = scmp.ne.s32.totalorder %s28, %s29
      %p40 = scmp.eq.s32.totalorder %s20, 0
      %p41 = por %p39, %p40
      %p42 = scmp.ne.s32.totalorder %s28, %s29
      %p43 = scmp.eq.s32.totalorder %s21, 1
      %p44 = por %p42, %p43
      %p46 = scmp.ne.s32.totalorder %s29, %s45
      %p47 = scmp.eq.s32.totalorder %s21, 0
      %p48 = por %p46, %p47
      %s50 = sadd.s32 %s49, 1
      %p53 = scmp.eq.s32.totalorder %s15, 1
      %p54 = scmp.ne.s32.totalorder %s49, %s51
      %p55 = scmp.eq.s32.totalorder %s15, 0
      %p56 = por %p54, %p55
      %p57 = scmp.ne.s32.totalorder %s49, %s51
      %p58 = scmp.eq.s32.totalorder %s20, 1
      %p59 = por %p57, %p58
      %p60 = scmp.ne.s32.totalorder %s51, %s52
      %p61 = scmp.eq.s32.totalorder %s20, 0
      %p62 = por %p60, %p61
      %p63 = scmp.ne.s32.totalorder %s51, %s52
      %p64 = scmp.eq.s32.totalorder %s21, 1
      %p65 = por %p63, %p64
      %p67 = scmp.ne.s32.totalorder %s52, %s66
      %p68 = scmp.eq.s32.totalorder %s21, 0
      %p69 = por %p67, %p68
      %s71 = sadd.s32 %s70, 1
      %p74 = scmp.eq.s32.totalorder %s15, 1
      %p75 = scmp.ne.s32.totalorder %s70, %s72
      %p76 = scmp.eq.s32.totalorder %s15, 0
      %p77 = por %p75, %p76
      %p78 = scmp.ne.s32.totalorder %s70, %s72
      %p79 = scmp.eq.s32.totalorder %s20, 1
      %p80 = por %p78, %p79
      %p81 = scmp.ne.s32.totalorder %s72, %s73
      %p82 = scmp.eq.s32.totalorder %s20, 0
      %p83 = por %p81, %p82
      %p84 = scmp.ne.s32.totalorder %s72, %s73
      %p85 = scmp.eq.s32.totalorder %s21, 1
      %p86 = por %p84, %p85
      %p88 = scmp.ne.s32.totalorder %s73, %s87
      %p89 = scmp.eq.s32.totalorder %s21, 0
      %p90 = por %p88, %p89
      %s92 = sadd.s32 %s91, 1
      %p95 = scmp.eq.s32.totalorder %s15, 1
      %p96 = scmp.ne.s32.totalorder %s91, %s93
      %p97 = scmp.eq.s32.totalorder %s15, 0
      %p98 = por %p96, %p97
      %p99 = scmp.ne.s32.totalorder %s91, %s93
      %p100 = scmp.eq.s32.totalorder %s20, 1
      %p101 = por %p99, %p100
      %p102 = scmp.ne.s32.totalorder %s93, %s94
      %p103 = scmp.eq.s32.totalorder %s20, 0
      %p104 = por %p102, %p103
      %p105 = scmp.ne.s32.totalorder %s93, %s94
      %p106 = scmp.eq.s32.totalorder %s21, 1
      %p107 = por %p105, %p106
      %p109 = scmp.ne.s32.totalorder %s94, %s108
      %p110 = scmp.eq.s32.totalorder %s21, 0
      %p111 = por %p109, %p110
      %s113 = sadd.s32 %s112, 1
      %p116 = scmp.eq.s32.totalorder %s15, 1
      %p117 = scmp.ne.s32.totalorder %s112, %s114
      %p118 = scmp.eq.s32.totalorder %s15, 0
      %p119 = por %p117, %p118
      %p120 = scmp.ne.s32.totalorder %s112, %s114
      %p121 = scmp.eq.s32.totalorder %s20, 1
      %p122 = por %p120, %p121
      %p123 = scmp.ne.s32.totalorder %s114, %s115
      %p124 = scmp.eq.s32.totalorder %s20, 0
      %p125 = por %p123, %p124
      %p126 = scmp.ne.s32.totalorder %s114, %s115
      %p127 = scmp.eq.s32.totalorder %s21, 1
      %p128 = por %p126, %p127
      %p130 = scmp.ne.s32.totalorder %s115, %s129
      %p131 = scmp.eq.s32.totalorder %s21, 0
      %p132 = por %p130, %p131
      %s134 = sadd.s32 %s133, 1
      %p137 = scmp.eq.s32.totalorder %s15, 1
      %p138 = scmp.ne.s32.totalorder %s133, %s135
      %p139 = scmp.eq.s32.totalorder %s15, 0
      %p140 = por %p138, %p139
      %p141 = scmp.ne.s32.totalorder %s133, %s135
      %p142 = scmp.eq.s32.totalorder %s20, 1
      %p143 = por %p141, %p142
      %p144 = scmp.ne.s32.totalorder %s135, %s136
      %p145 = scmp.eq.s32.totalorder %s20, 0
      %p146 = por %p144, %p145
      %p147 = scmp.ne.s32.totalorder %s135, %s136
      %p148 = scmp.eq.s32.totalorder %s21, 1
      %p149 = por %p147, %p148
      %p151 = scmp.ne.s32.totalorder %s136, %s150
      %p152 = scmp.eq.s32.totalorder %s21, 0
      %p153 = por %p151, %p152
      %s155 = sadd.s32 %s154, 1
      %p158 = scmp.eq.s32.totalorder %s15, 1
      %p159 = scmp.ne.s32.totalorder %s154, %s156
      %p160 = scmp.eq.s32.totalorder %s15, 0
      %p161 = por %p159, %p160
      %p162 = scmp.ne.s32.totalorder %s154, %s156
      %p163 = scmp.eq.s32.totalorder %s20, 1
      %p164 = por %p162, %p163
      %p165 = scmp.ne.s32.totalorder %s156, %s157
      %p166 = scmp.eq.s32.totalorder %s20, 0
      %p167 = por %p165, %p166
      %p168 = scmp.ne.s32.totalorder %s156, %s157
      %p169 = scmp.eq.s32.totalorder %s21, 1
      %p170 = por %p168, %p169
      %p172 = scmp.ne.s32.totalorder %s157, %s171
      %p173 = scmp.eq.s32.totalorder %s21, 0
      %p174 = por %p172, %p173
      %s176 = sadd.s32 %s175, 1
      %p179 = scmp.eq.s32.totalorder %s15, 1
      %p180 = scmp.ne.s32.totalorder %s175, %s177
      %p181 = scmp.eq.s32.totalorder %s15, 0
      %p182 = por %p180, %p181
      %p183 = scmp.ne.s32.totalorder %s175, %s177
      %p184 = scmp.eq.s32.totalorder %s20, 1
      %p185 = por %p183, %p184
      %p186 = scmp.ne.s32.totalorder %s177, %s178
      %p187 = scmp.eq.s32.totalorder %s20, 0
      %p188 = por %p186, %p187
      %p189 = scmp.ne.s32.totalorder %s177, %s178
      %p190 = scmp.eq.s32.totalorder %s21, 1
      %p191 = por %p189, %p190
      %p193 = scmp.ne.s32.totalorder %s178, %s192
      %p194 = scmp.eq.s32.totalorder %s21, 0
      %p195 = por %p193, %p194
      %p196 = scmp.le.s32.totalorder 1, %s15
      %p197 = scmp.lt.s32.totalorder %s15, 3
      %p198 = pnand %p196, %p197
      %p199 = pneg %p198
      // Predicated region
      $region9: #{tpu_custom_call.1} parent=5 // pred_check
        _
      $region10: #{tpu_custom_call.1} parent=5 // pred_check_branch
        %201 = sbr.rel (%p198) target = $region12
      $region11: #{tpu_custom_call.1} parent=5 // pred_region
        %s202 = ssub.s32 %s15, 1
        // Predicated region
        $region13: #{tpu_custom_call.1} parent=11 // pred_check
          %p203 = pneg %p62
        $region14: #{tpu_custom_call.1} parent=11 // pred_check_branch
          %205 = sbr.rel (%p203) target = $region16
        $region15: #{tpu_custom_call.1} parent=11 // pred_region
          _
        $region16: #{tpu_custom_call.1} parent=11 // pred_fallthru
          _
        // Predicated region
        $region17: #{tpu_custom_call.1} parent=11 // pred_check
          %p206 = pneg %p83
        $region18: #{tpu_custom_call.1} parent=11 // pred_check_branch
          %208 = sbr.rel (%p206) target = $region20
        $region19: #{tpu_custom_call.1} parent=11 // pred_region
          _
        $region20: #{tpu_custom_call.1} parent=11 // pred_fallthru
          _
        // Predicated region
        $region21: #{tpu_custom_call.1} parent=11 // pred_check
          %p209 = pneg %p104
        $region22: #{tpu_custom_call.1} parent=11 // pred_check_branch
          %211 = sbr.rel (%p209) target = $region24
        $region23: #{tpu_custom_call.1} parent=11 // pred_region
          _
        $region24: #{tpu_custom_call.1} parent=11 // pred_fallthru
          _
        // Predicated region
        $region25: #{tpu_custom_call.1} parent=11 // pred_check
          %p212 = pneg %p125
        $region26: #{tpu_custom_call.1} parent=11 // pred_check_branch
          %214 = sbr.rel (%p212) target = $region28
        $region27: #{tpu_custom_call.1} parent=11 // pred_region
          _
        $region28: #{tpu_custom_call.1} parent=11 // pred_fallthru
          _
        // Predicated region
        $region29: #{tpu_custom_call.1} parent=11 // pred_check
          %p215 = pneg %p146
        $region30: #{tpu_custom_call.1} parent=11 // pred_check_branch
          %217 = sbr.rel (%p215) target = $region32
        $region31: #{tpu_custom_call.1} parent=11 // pred_region
          _
        $region32: #{tpu_custom_call.1} parent=11 // pred_fallthru
          _
        // Predicated region
        $region33: #{tpu_custom_call.1} parent=11 // pred_check
          %p218 = pneg %p167
        $region34: #{tpu_custom_call.1} parent=11 // pred_check_branch
          %220 = sbr.rel (%p218) target = $region36
        $region35: #{tpu_custom_call.1} parent=11 // pred_region
          _
        $region36: #{tpu_custom_call.1} parent=11 // pred_fallthru
          _
      $region12: #{tpu_custom_call.1} parent=5 // pred_fallthru
        _
      %p221 = scmp.lt.s32.totalorder %s15, 2
      // Predicated region
      $region37: #{tpu_custom_call.1} parent=5 // pred_check
        %p222 = pneg %p221
      $region38: #{tpu_custom_call.1} parent=5 // pred_check_branch
        %224 = sbr.rel (%p222) target = $region40
      $region39: #{tpu_custom_call.1} parent=5 // pred_region
        // Predicated region
        $region41: #{tpu_custom_call.1} parent=39 // pred_check
          %p225 = pneg %p35
        $region42: #{tpu_custom_call.1} parent=39 // pred_check_branch
          %227 = sbr.rel (%p225) target = $region44
        $region43: #{tpu_custom_call.1} parent=39 // pred_region
          %s228 = sand.u32 %s25, 1
          %s229 = sand.u32 %s25, 1
          %s230 = smul.addr %s229, 4
          %s231 = scalar_lea.vmem [#allocation4], %s230
          %s232 = smul.addr %s15, 2
          %s233 = scalar_lea.vmem %s0, %s232
          // Predicated region
          $region45: #{tpu_custom_call.1} parent=43 // pred_check
            _
          $region46: #{tpu_custom_call.1} parent=43 // pred_check_branch
            %235 = sbr.rel (0) target = $region48
          $region47: #{tpu_custom_call.1} parent=43 // pred_region
            // Predicated region
            $region49: #{tpu_custom_call.1} parent=47 // pred_check
              _
            $region50: #{tpu_custom_call.1} parent=47 // pred_check_branch
              %237 = sbr.rel target = $region52
            $region51: #{tpu_custom_call.1} parent=47 // pred_region
              // Predicated region
              $region64: #{tpu_custom_call.1} parent=51 // pred_check
                _
              $region65: #{tpu_custom_call.1} parent=51 // pred_check_branch
                %255 = sbr.rel (0) target = $region67
              $region66: #{tpu_custom_call.1} parent=51 // pred_region
                %s257 = ssub.s32 4, 1
                loop: start=0, step=1, limit=1
                $region68: #{tpu_custom_call.1} parent=66 // loop_pre_header
                  _
                $region69: #{tpu_custom_call.1} parent=66 // loop_header
                  %s259 = sphi 0, %s263
                  %p260 = scmp.ge.s32.totalorder %s259, 1
                  %s264 = sphi %s233, %s233
                  %s265 = sphi %s231, %s231
                $region70: #{tpu_custom_call.1} parent=66 // loop_header_branch
                  %262 = sbr.rel (%p260) target = $region74
                $region71: #{tpu_custom_call.1} parent=66 // loop_body
                  %v266 = vld [vmem:[%s264] sm:%s257]
                  %267 = vst [vmem:[%s265] sm:%s257] %v266
                  %v268 = vld [vmem:[%s264 + $0x4] sm:%s257]
                  %269 = vst [vmem:[%s265 + $0x2] sm:%s257] %v268
                $region72: #{tpu_custom_call.1} parent=66 // loop_footer
                  %s263 = sadd.s32 1, %s259
                $region73: #{tpu_custom_call.1} parent=66 // loop_footer_branch
                  %258 = sbr.rel target = $region69
                $region74: #{tpu_custom_call.1} parent=66 // loop_exit
                  _
              $region67: #{tpu_custom_call.1} parent=51 // pred_fallthru
                _
            $region52: #{tpu_custom_call.1} parent=47 // pred_fallthru
              _
            // Predicated region
            $region53: #{tpu_custom_call.1} parent=47 // pred_check
              _
            $region54: #{tpu_custom_call.1} parent=47 // pred_check_branch
              %239 = sbr.rel (0) target = $region56
            $region55: #{tpu_custom_call.1} parent=47 // pred_region
              %s241 = ssub.s32 4, 1
              loop: start=0, step=1, limit=1
              $region57: #{tpu_custom_call.1} parent=55 // loop_pre_header
                _
              $region58: #{tpu_custom_call.1} parent=55 // loop_header
                %s243 = sphi 0, %s247
                %p244 = scmp.ge.s32.totalorder %s243, 1
                %s248 = sphi %s233, %s233
                %s249 = sphi %s231, %s231
              $region59: #{tpu_custom_call.1} parent=55 // loop_header_branch
                %246 = sbr.rel (%p244) target = $region63
              $region60: #{tpu_custom_call.1} parent=55 // loop_body
                %v250 = vld [vmem:[%s248] sm:%s241]
                %251 = vst [vmem:[%s249] sm:%s241] %v250
                %v252 = vld [vmem:[%s248 + $0x4] sm:%s241]
                %253 = vst [vmem:[%s249 + $0x2] sm:%s241] %v252
              $region61: #{tpu_custom_call.1} parent=55 // loop_footer
                %s247 = sadd.s32 1, %s243
              $region62: #{tpu_custom_call.1} parent=55 // loop_footer_branch
                %242 = sbr.rel target = $region58
              $region63: #{tpu_custom_call.1} parent=55 // loop_exit
                _
            $region56: #{tpu_custom_call.1} parent=47 // pred_fallthru
              _
          $region48: #{tpu_custom_call.1} parent=43 // pred_fallthru
            _
          %270 = vnop
        $region44: #{tpu_custom_call.1} parent=39 // pred_fallthru
          _
      $region40: #{tpu_custom_call.1} parent=5 // pred_fallthru
        _
      %p271 = scmp.le.s32.totalorder 1, %s15
      %p272 = scmp.lt.s32.totalorder %s15, 3
      %p273 = pnand %p271, %p272
      %p274 = pneg %p273
      // Predicated region
      $region75: #{tpu_custom_call.1} parent=5 // pred_check
        _
      $region76: #{tpu_custom_call.1} parent=5 // pred_check_branch
        %276 = sbr.rel (%p273) target = $region78
      $region77: #{tpu_custom_call.1} parent=5 // pred_region
        %s277 = ssub.s32 %s15, 1
        %s278 = sand.u32 %s28, 1
        %s279 = sand.u32 %s28, 1
        %s280 = smul.addr %s279, 4
        %s281 = scalar_lea.vmem [#allocation4], %s280
        // Predicated region
        $region79: #{tpu_custom_call.1} parent=77 // pred_check
          %p282 = pneg %p41
        $region80: #{tpu_custom_call.1} parent=77 // pred_check_branch
          %284 = sbr.rel (%p282) target = $region82
        $region81: #{tpu_custom_call.1} parent=77 // pred_region
          _
        $region82: #{tpu_custom_call.1} parent=77 // pred_fallthru
          _
        %s285 = sand.u32 %s28, 1
        %s286 = sand.u32 %s28, 1
        %s287 = smul.addr %s286, 4
        %s288 = scalar_lea.vmem [#allocation4], %s287
        %p289 = pneg %p41
        %p290 = pneg %p38
        %p291 = pneg %p62
        %p292 = pneg %p59
        %p293 = pneg %p83
        %p294 = pneg %p80
        %p295 = pneg %p104
        %p296 = pneg %p101
        %p297 = pneg %p125
        %p298 = pneg %p122
        %p299 = pneg %p146
        %p300 = pneg %p143
        %p301 = pneg %p167
        %p302 = pneg %p164
        %p303 = pneg %p188
        %p304 = pneg %p185
        %p305 = scmp.eq.s32.totalorder %s20, 0
        // Predicated region
        $region83: #{tpu_custom_call.1} parent=77 // pred_check
          %p306 = pneg %p305
        $region84: #{tpu_custom_call.1} parent=77 // pred_check_branch
          %308 = sbr.rel (%p306) target = $region86
        $region85: #{tpu_custom_call.1} parent=77 // pred_region
          %309 = vst [vmem:[#allocation2] sm:$0x3] 0.0
        $region86: #{tpu_custom_call.1} parent=77 // pred_fallthru
          _
        %v310 = vld [vmem:[%s281] sm:$0x3]
        %v311 = vld [vmem:[%s281 + $0x2] sm:$0x3]
        %v312 = vunpack.c.l.bf16 %v310
        %v313 = vunpack.c.l.bf16 %v311
        %v314 = vld [vmem:[%s1] sm:$0xff]
        %v315 = vld [vmem:[%s1 + $0x8] sm:$0xff]
        %v316 = vld [vmem:[%s1 + $0x10] sm:$0xff]
        %v317 = vld [vmem:[%s1 + $0x18] sm:$0xff]
        %v318 = vld [vmem:[%s1 + $0x20] sm:$0xff]
        %v319 = vld [vmem:[%s1 + $0x28] sm:$0xff]
        %v320 = vld [vmem:[%s1 + $0x30] sm:$0xff]
        %v321 = vld [vmem:[%s1 + $0x38] sm:$0xff]
        %v322 = vld [vmem:[%s1 + $0x40] sm:$0xff]
        %v323 = vld [vmem:[%s1 + $0x48] sm:$0xff]
        %v324 = vld [vmem:[%s1 + $0x50] sm:$0xff]
        %v325 = vld [vmem:[%s1 + $0x58] sm:$0xff]
        %v326 = vld [vmem:[%s1 + $0x60] sm:$0xff]
        %v327 = vld [vmem:[%s1 + $0x68] sm:$0xff]
        %v328 = vld [vmem:[%s1 + $0x70] sm:$0xff]
        %v329 = vld [vmem:[%s1 + $0x78] sm:$0xff]
        %v330 = vlaneseq
        %v331 = vshrl.u32 %v330, 7
        %v332 = vsub.s32 0, %v331
        %v333 = vrot.slane %v312, %v332
        %v334 = vlaneseq
        %v335 = vshrl.u32 %v334, 7
        %v336 = vsub.s32 0, %v335
        %v337 = vrot.slane %v313, %v336
        %339 = vset.pattern.permute.xlu0 0
        %340 = vperm.xlu0 %339, %v314
        %v341 = vpop.permute.xlu0 %340
        %344 = vset.pattern.permute.xlu0 0
        %345 = vperm.xlu0 %344, %v315
        %v346 = vpop.permute.xlu0 %345
        %349 = vset.pattern.permute.xlu0 0
        %350 = vperm.xlu0 %349, %v316
        %v351 = vpop.permute.xlu0 %350
        %354 = vset.pattern.permute.xlu0 0
        %355 = vperm.xlu0 %354, %v317
        %v356 = vpop.permute.xlu0 %355
        %359 = vset.pattern.permute.xlu0 0
        %360 = vperm.xlu0 %359, %v318
        %v361 = vpop.permute.xlu0 %360
        %364 = vset.pattern.permute.xlu0 0
        %365 = vperm.xlu0 %364, %v319
        %v366 = vpop.permute.xlu0 %365
        %369 = vset.pattern.permute.xlu0 0
        %370 = vperm.xlu0 %369, %v320
        %v371 = vpop.permute.xlu0 %370
        %374 = vset.pattern.permute.xlu0 0
        %375 = vperm.xlu0 %374, %v321
        %v376 = vpop.permute.xlu0 %375
        %379 = vset.pattern.permute.xlu0 0
        %380 = vperm.xlu0 %379, %v322
        %v381 = vpop.permute.xlu0 %380
        %384 = vset.pattern.permute.xlu0 0
        %385 = vperm.xlu0 %384, %v323
        %v386 = vpop.permute.xlu0 %385
        %389 = vset.pattern.permute.xlu0 0
        %390 = vperm.xlu0 %389, %v324
        %v391 = vpop.permute.xlu0 %390
        %394 = vset.pattern.permute.xlu0 0
        %395 = vperm.xlu0 %394, %v325
        %v396 = vpop.permute.xlu0 %395
        %399 = vset.pattern.permute.xlu0 0
        %400 = vperm.xlu0 %399, %v326
        %v401 = vpop.permute.xlu0 %400
        %404 = vset.pattern.permute.xlu0 0
        %405 = vperm.xlu0 %404, %v327
        %v406 = vpop.permute.xlu0 %405
        %409 = vset.pattern.permute.xlu0 0
        %410 = vperm.xlu0 %409, %v328
        %v411 = vpop.permute.xlu0 %410
        %414 = vset.pattern.permute.xlu0 0
        %415 = vperm.xlu0 %414, %v329
        %v416 = vpop.permute.xlu0 %415
        %v418 = vmul.f32 %v333, %v341
        %v419 = vmul.f32 %v333, %v346
        %v420 = vmul.f32 %v333, %v351
        %v421 = vmul.f32 %v333, %v356
        %v422 = vmul.f32 %v333, %v361
        %v423 = vmul.f32 %v333, %v366
        %v424 = vmul.f32 %v333, %v371
        %v425 = vmul.f32 %v333, %v376
        %v426 = vmul.f32 %v333, %v381
        %v427 = vmul.f32 %v333, %v386
        %v428 = vmul.f32 %v333, %v391
        %v429 = vmul.f32 %v333, %v396
        %v430 = vmul.f32 %v333, %v401
        %v431 = vmul.f32 %v333, %v406
        %v432 = vmul.f32 %v333, %v411
        %v433 = vmul.f32 %v333, %v416
        %v434 = vmul.f32 %v337, %v341
        %v435 = vmul.f32 %v337, %v346
        %v436 = vmul.f32 %v337, %v351
        %v437 = vmul.f32 %v337, %v356
        %v438 = vmul.f32 %v337, %v361
        %v439 = vmul.f32 %v337, %v366
        %v440 = vmul.f32 %v337, %v371
        %v441 = vmul.f32 %v337, %v376
        %v442 = vmul.f32 %v337, %v381
        %v443 = vmul.f32 %v337, %v386
        %v444 = vmul.f32 %v337, %v391
        %v445 = vmul.f32 %v337, %v396
        %v446 = vmul.f32 %v337, %v401
        %v447 = vmul.f32 %v337, %v406
        %v448 = vmul.f32 %v337, %v411
        %v449 = vmul.f32 %v337, %v416
        %v450 = vlaneseq
        %v451 = vshrl.u32 %v450, 7
        %v452 = vsub.s32 1, %v451
        %v453 = vrot.slane %v312, %v452
        %v454 = vlaneseq
        %v455 = vshrl.u32 %v454, 7
        %v456 = vsub.s32 1, %v455
        %v457 = vrot.slane %v313, %v456
        %458 = vset.pattern.permute.xlu0 1
        %459 = vperm.xlu0 %458, %v314
        %v460 = vpop.permute.xlu0 %459
        %462 = vset.pattern.permute.xlu0 1
        %463 = vperm.xlu0 %462, %v315
        %v464 = vpop.permute.xlu0 %463
        %466 = vset.pattern.permute.xlu0 1
        %467 = vperm.xlu0 %466, %v316
        %v468 = vpop.permute.xlu0 %467
        %470 = vset.pattern.permute.xlu0 1
        %471 = vperm.xlu0 %470, %v317
        %v472 = vpop.permute.xlu0 %471
        %474 = vset.pattern.permute.xlu0 1
        %475 = vperm.xlu0 %474, %v318
        %v476 = vpop.permute.xlu0 %475
        %478 = vset.pattern.permute.xlu0 1
        %479 = vperm.xlu0 %478, %v319
        %v480 = vpop.permute.xlu0 %479
        %482 = vset.pattern.permute.xlu0 1
        %483 = vperm.xlu0 %482, %v320
        %v484 = vpop.permute.xlu0 %483
        %486 = vset.pattern.permute.xlu0 1
        %487 = vperm.xlu0 %486, %v321
        %v488 = vpop.permute.xlu0 %487
        %490 = vset.pattern.permute.xlu0 1
        %491 = vperm.xlu0 %490, %v322
        %v492 = vpop.permute.xlu0 %491
        %494 = vset.pattern.permute.xlu0 1
        %495 = vperm.xlu0 %494, %v323
        %v496 = vpop.permute.xlu0 %495
        %498 = vset.pattern.permute.xlu0 1
        %499 = vperm.xlu0 %498, %v324
        %v500 = vpop.permute.xlu0 %499
        %502 = vset.pattern.permute.xlu0 1
        %503 = vperm.xlu0 %502, %v325
        %v504 = vpop.permute.xlu0 %503
        %506 = vset.pattern.permute.xlu0 1
        %507 = vperm.xlu0 %506, %v326
        %v508 = vpop.permute.xlu0 %507
        %510 = vset.pattern.permute.xlu0 1
        %511 = vperm.xlu0 %510, %v327
        %v512 = vpop.permute.xlu0 %511
        %514 = vset.pattern.permute.xlu0 1
        %515 = vperm.xlu0 %514, %v328
        %v516 = vpop.permute.xlu0 %515
        %518 = vset.pattern.permute.xlu0 1
        %519 = vperm.xlu0 %518, %v329
        %v520 = vpop.permute.xlu0 %519
        %v522 = vmul.f32 %v453, %v460
        %v523 = vmul.f32 %v453, %v464
        %v524 = vmul.f32 %v453, %v468
        %v525 = vmul.f32 %v453, %v472
        %v526 = vmul.f32 %v453, %v476
        %v527 = vmul.f32 %v453, %v480
        %v528 = vmul.f32 %v453, %v484
        %v529 = vmul.f32 %v453, %v488
        %v530 = vmul.f32 %v453, %v492
        %v531 = vmul.f32 %v453, %v496
        %v532 = vmul.f32 %v453, %v500
        %v533 = vmul.f32 %v453, %v504
        %v534 = vmul.f32 %v453, %v508
        %v535 = vmul.f32 %v453, %v512
        %v536 = vmul.f32 %v453, %v516
        %v537 = vmul.f32 %v453, %v520
        %v538 = vmul.f32 %v457, %v460
        %v539 = vmul.f32 %v457, %v464
        %v540 = vmul.f32 %v457, %v468
        %v541 = vmul.f32 %v457, %v472
        %v542 = vmul.f32 %v457, %v476
        %v543 = vmul.f32 %v457, %v480
        %v544 = vmul.f32 %v457, %v484
        %v545 = vmul.f32 %v457, %v488
        %v546 = vmul.f32 %v457, %v492
        %v547 = vmul.f32 %v457, %v496
        %v548 = vmul.f32 %v457, %v500
        %v549 = vmul.f32 %v457, %v504
        %v550 = vmul.f32 %v457, %v508
        %v551 = vmul.f32 %v457, %v512
        %v552 = vmul.f32 %v457, %v516
        %v553 = vmul.f32 %v457, %v520
        %v554 = vadd.f32 %v418, %v522
        %v555 = vadd.f32 %v419, %v523
        %v556 = vadd.f32 %v420, %v524
        %v557 = vadd.f32 %v421, %v525
        %v558 = vadd.f32 %v422, %v526
        %v559 = vadd.f32 %v423, %v527
        %v560 = vadd.f32 %v424, %v528
        %v561 = vadd.f32 %v425, %v529
        %v562 = vadd.f32 %v426, %v530
        %v563 = vadd.f32 %v427, %v531
        %v564 = vadd.f32 %v428, %v532
        %v565 = vadd.f32 %v429, %v533
        %v566 = vadd.f32 %v430, %v534
        %v567 = vadd.f32 %v431, %v535
        %v568 = vadd.f32 %v432, %v536
        %v569 = vadd.f32 %v433, %v537
        %v570 = vadd.f32 %v434, %v538
        %v571 = vadd.f32 %v435, %v539
        %v572 = vadd.f32 %v436, %v540
        %v573 = vadd.f32 %v437, %v541
        %v574 = vadd.f32 %v438, %v542
        %v575 = vadd.f32 %v439, %v543
        %v576 = vadd.f32 %v440, %v544
        %v577 = vadd.f32 %v441, %v545
        %v578 = vadd.f32 %v442, %v546
        %v579 = vadd.f32 %v443, %v547
        %v580 = vadd.f32 %v444, %v548
        %v581 = vadd.f32 %v445, %v549
        %v582 = vadd.f32 %v446, %v550
        %v583 = vadd.f32 %v447, %v551
        %v584 = vadd.f32 %v448, %v552
        %v585 = vadd.f32 %v449, %v553
        %v586 = vlaneseq
        %v587 = vshrl.u32 %v586, 7
        %v588 = vsub.s32 2, %v587
        %v589 = vrot.slane %v312, %v588
        %v590 = vlaneseq
        %v591 = vshrl.u32 %v590, 7
        %v592 = vsub.s32 2, %v591
        %v593 = vrot.slane %v313, %v592
        %594 = vset.pattern.permute.xlu0 2
        %595 = vperm.xlu0 %594, %v314
        %v596 = vpop.permute.xlu0 %595
        %598 = vset.pattern.permute.xlu0 2
        %599 = vperm.xlu0 %598, %v315
        %v600 = vpop.permute.xlu0 %599
        %602 = vset.pattern.permute.xlu0 2
        %603 = vperm.xlu0 %602, %v316
        %v604 = vpop.permute.xlu0 %603
        %606 = vset.pattern.permute.xlu0 2
        %607 = vperm.xlu0 %606, %v317
        %v608 = vpop.permute.xlu0 %607
        %610 = vset.pattern.permute.xlu0 2
        %611 = vperm.xlu0 %610, %v318
        %v612 = vpop.permute.xlu0 %611
        %614 = vset.pattern.permute.xlu0 2
        %615 = vperm.xlu0 %614, %v319
        %v616 = vpop.permute.xlu0 %615
        %618 = vset.pattern.permute.xlu0 2
        %619 = vperm.xlu0 %618, %v320
        %v620 = vpop.permute.xlu0 %619
        %622 = vset.pattern.permute.xlu0 2
        %623 = vperm.xlu0 %622, %v321
        %v624 = vpop.permute.xlu0 %623
        %626 = vset.pattern.permute.xlu0 2
        %627 = vperm.xlu0 %626, %v322
        %v628 = vpop.permute.xlu0 %627
        %630 = vset.pattern.permute.xlu0 2
        %631 = vperm.xlu0 %630, %v323
        %v632 = vpop.permute.xlu0 %631
        %634 = vset.pattern.permute.xlu0 2
        %635 = vperm.xlu0 %634, %v324
        %v636 = vpop.permute.xlu0 %635
        %638 = vset.pattern.permute.xlu0 2
        %639 = vperm.xlu0 %638, %v325
        %v640 = vpop.permute.xlu0 %639
        %642 = vset.pattern.permute.xlu0 2
        %643 = vperm.xlu0 %642, %v326
        %v644 = vpop.permute.xlu0 %643
        %646 = vset.pattern.permute.xlu0 2
        %647 = vperm.xlu0 %646, %v327
        %v648 = vpop.permute.xlu0 %647
        %650 = vset.pattern.permute.xlu0 2
        %651 = vperm.xlu0 %650, %v328
        %v652 = vpop.permute.xlu0 %651
        %654 = vset.pattern.permute.xlu0 2
        %655 = vperm.xlu0 %654, %v329
        %v656 = vpop.permute.xlu0 %655
        %v658 = vmul.f32 %v589, %v596
        %v659 = vmul.f32 %v589, %v600
        %v660 = vmul.f32 %v589, %v604
        %v661 = vmul.f32 %v589, %v608
        %v662 = vmul.f32 %v589, %v612
        %v663 = vmul.f32 %v589, %v616
        %v664 = vmul.f32 %v589, %v620
        %v665 = vmul.f32 %v589, %v624
        %v666 = vmul.f32 %v589, %v628
        %v667 = vmul.f32 %v589, %v632
        %v668 = vmul.f32 %v589, %v636
        %v669 = vmul.f32 %v589, %v640
        %v670 = vmul.f32 %v589, %v644
        %v671 = vmul.f32 %v589, %v648
        %v672 = vmul.f32 %v589, %v652
        %v673 = vmul.f32 %v589, %v656
        %v674 = vmul.f32 %v593, %v596
        %v675 = vmul.f32 %v593, %v600
        %v676 = vmul.f32 %v593, %v604
        %v677 = vmul.f32 %v593, %v608
        %v678 = vmul.f32 %v593, %v612
        %v679 = vmul.f32 %v593, %v616
        %v680 = vmul.f32 %v593, %v620
        %v681 = vmul.f32 %v593, %v624
        %v682 = vmul.f32 %v593, %v628
        %v683 = vmul.f32 %v593, %v632
        %v684 = vmul.f32 %v593, %v636
        %v685 = vmul.f32 %v593, %v640
        %v686 = vmul.f32 %v593, %v644
        %v687 = vmul.f32 %v593, %v648
        %v688 = vmul.f32 %v593, %v652
        %v689 = vmul.f32 %v593, %v656
        %v690 = vadd.f32 %v554, %v658
        %v691 = vadd.f32 %v555, %v659
        %v692 = vadd.f32 %v556, %v660
        %v693 = vadd.f32 %v557, %v661
        %v694 = vadd.f32 %v558, %v662
        %v695 = vadd.f32 %v559, %v663
        %v696 = vadd.f32 %v560, %v664
        %v697 = vadd.f32 %v561, %v665
        %v698 = vadd.f32 %v562, %v666
        %v699 = vadd.f32 %v563, %v667
        %v700 = vadd.f32 %v564, %v668
        %v701 = vadd.f32 %v565, %v669
        %v702 = vadd.f32 %v566, %v670
        %v703 = vadd.f32 %v567, %v671
        %v704 = vadd.f32 %v568, %v672
        %v705 = vadd.f32 %v569, %v673
        %v706 = vadd.f32 %v570, %v674
        %v707 = vadd.f32 %v571, %v675
        %v708 = vadd.f32 %v572, %v676
        %v709 = vadd.f32 %v573, %v677
        %v710 = vadd.f32 %v574, %v678
        %v711 = vadd.f32 %v575, %v679
        %v712 = vadd.f32 %v576, %v680
        %v713 = vadd.f32 %v577, %v681
        %v714 = vadd.f32 %v578, %v682
        %v715 = vadd.f32 %v579, %v683
        %v716 = vadd.f32 %v580, %v684
        %v717 = vadd.f32 %v581, %v685
        %v718 = vadd.f32 %v582, %v686
        %v719 = vadd.f32 %v583, %v687
        %v720 = vadd.f32 %v584, %v688
        %v721 = vadd.f32 %v585, %v689
        %v722 = vlaneseq
        %v723 = vshrl.u32 %v722, 7
        %v724 = vsub.s32 3, %v723
        %v725 = vrot.slane %v312, %v724
        %v726 = vlaneseq
        %v727 = vshrl.u32 %v726, 7
        %v728 = vsub.s32 3, %v727
        %v729 = vrot.slane %v313, %v728
        %730 = vset.pattern.permute.xlu0 3
        %731 = vperm.xlu0 %730, %v314
        %v732 = vpop.permute.xlu0 %731
        %734 = vset.pattern.permute.xlu0 3
        %735 = vperm.xlu0 %734, %v315
        %v736 = vpop.permute.xlu0 %735
        %738 = vset.pattern.permute.xlu0 3
        %739 = vperm.xlu0 %738, %v316
        %v740 = vpop.permute.xlu0 %739
        %742 = vset.pattern.permute.xlu0 3
        %743 = vperm.xlu0 %742, %v317
        %v744 = vpop.permute.xlu0 %743
        %746 = vset.pattern.permute.xlu0 3
        %747 = vperm.xlu0 %746, %v318
        %v748 = vpop.permute.xlu0 %747
        %750 = vset.pattern.permute.xlu0 3
        %751 = vperm.xlu0 %750, %v319
        %v752 = vpop.permute.xlu0 %751
        %754 = vset.pattern.permute.xlu0 3
        %755 = vperm.xlu0 %754, %v320
        %v756 = vpop.permute.xlu0 %755
        %758 = vset.pattern.permute.xlu0 3
        %759 = vperm.xlu0 %758, %v321
        %v760 = vpop.permute.xlu0 %759
        %762 = vset.pattern.permute.xlu0 3
        %763 = vperm.xlu0 %762, %v322
        %v764 = vpop.permute.xlu0 %763
        %766 = vset.pattern.permute.xlu0 3
        %767 = vperm.xlu0 %766, %v323
        %v768 = vpop.permute.xlu0 %767
        %770 = vset.pattern.permute.xlu0 3
        %771 = vperm.xlu0 %770, %v324
        %v772 = vpop.permute.xlu0 %771
        %774 = vset.pattern.permute.xlu0 3
        %775 = vperm.xlu0 %774, %v325
        %v776 = vpop.permute.xlu0 %775
        %778 = vset.pattern.permute.xlu0 3
        %779 = vperm.xlu0 %778, %v326
        %v780 = vpop.permute.xlu0 %779
        %782 = vset.pattern.permute.xlu0 3
        %783 = vperm.xlu0 %782, %v327
        %v784 = vpop.permute.xlu0 %783
        %786 = vset.pattern.permute.xlu0 3
        %787 = vperm.xlu0 %786, %v328
        %v788 = vpop.permute.xlu0 %787
        %790 = vset.pattern.permute.xlu0 3
        %791 = vperm.xlu0 %790, %v329
        %v792 = vpop.permute.xlu0 %791
        %v794 = vmul.f32 %v725, %v732
        %v795 = vmul.f32 %v725, %v736
        %v796 = vmul.f32 %v725, %v740
        %v797 = vmul.f32 %v725, %v744
        %v798 = vmul.f32 %v725, %v748
        %v799 = vmul.f32 %v725, %v752
        %v800 = vmul.f32 %v725, %v756
        %v801 = vmul.f32 %v725, %v760
        %v802 = vmul.f32 %v725, %v764
        %v803 = vmul.f32 %v725, %v768
        %v804 = vmul.f32 %v725, %v772
        %v805 = vmul.f32 %v725, %v776
        %v806 = vmul.f32 %v725, %v780
        %v807 = vmul.f32 %v725, %v784
        %v808 = vmul.f32 %v725, %v788
        %v809 = vmul.f32 %v725, %v792
        %v810 = vmul.f32 %v729, %v732
        %v811 = vmul.f32 %v729, %v736
        %v812 = vmul.f32 %v729, %v740
        %v813 = vmul.f32 %v729, %v744
        %v814 = vmul.f32 %v729, %v748
        %v815 = vmul.f32 %v729, %v752
        %v816 = vmul.f32 %v729, %v756
        %v817 = vmul.f32 %v729, %v760
        %v818 = vmul.f32 %v729, %v764
        %v819 = vmul.f32 %v729, %v768
        %v820 = vmul.f32 %v729, %v772
        %v821 = vmul.f32 %v729, %v776
        %v822 = vmul.f32 %v729, %v780
        %v823 = vmul.f32 %v729, %v784
        %v824 = vmul.f32 %v729, %v788
        %v825 = vmul.f32 %v729, %v792
        %v826 = vadd.f32 %v690, %v794
        %v827 = vadd.f32 %v691, %v795
        %v828 = vadd.f32 %v692, %v796
        %v829 = vadd.f32 %v693, %v797
        %v830 = vadd.f32 %v694, %v798
        %v831 = vadd.f32 %v695, %v799
        %v832 = vadd.f32 %v696, %v800
        %v833 = vadd.f32 %v697, %v801
        %v834 = vadd.f32 %v698, %v802
        %v835 = vadd.f32 %v699, %v803
        %v836 = vadd.f32 %v700, %v804
        %v837 = vadd.f32 %v701, %v805
        %v838 = vadd.f32 %v702, %v806
        %v839 = vadd.f32 %v703, %v807
        %v840 = vadd.f32 %v704, %v808
        %v841 = vadd.f32 %v705, %v809
        %v842 = vadd.f32 %v706, %v810
        %v843 = vadd.f32 %v707, %v811
        %v844 = vadd.f32 %v708, %v812
        %v845 = vadd.f32 %v709, %v813
        %v846 = vadd.f32 %v710, %v814
        %v847 = vadd.f32 %v711, %v815
        %v848 = vadd.f32 %v712, %v816
        %v849 = vadd.f32 %v713, %v817
        %v850 = vadd.f32 %v714, %v818
        %v851 = vadd.f32 %v715, %v819
        %v852 = vadd.f32 %v716, %v820
        %v853 = vadd.f32 %v717, %v821
        %v854 = vadd.f32 %v718, %v822
        %v855 = vadd.f32 %v719, %v823
        %v856 = vadd.f32 %v720, %v824
        %v857 = vadd.f32 %v721, %v825
        %v858 = vld [vmem:[%s2] sm:$0xff]
        %v859 = vld [vmem:[%s2 + $0x8] sm:$0xff]
        %v860 = vld [vmem:[%s2 + $0x10] sm:$0xff]
        %v861 = vld [vmem:[%s2 + $0x18] sm:$0xff]
        %v862 = vld [vmem:[%s2 + $0x20] sm:$0xff]
        %v863 = vld [vmem:[%s2 + $0x28] sm:$0xff]
        %v864 = vld [vmem:[%s2 + $0x30] sm:$0xff]
        %v865 = vld [vmem:[%s2 + $0x38] sm:$0xff]
        %v866 = vld [vmem:[%s2 + $0x40] sm:$0xff]
        %v867 = vld [vmem:[%s2 + $0x48] sm:$0xff]
        %v868 = vld [vmem:[%s2 + $0x50] sm:$0xff]
        %v869 = vld [vmem:[%s2 + $0x58] sm:$0xff]
        %v870 = vld [vmem:[%s2 + $0x60] sm:$0xff]
        %v871 = vld [vmem:[%s2 + $0x68] sm:$0xff]
        %v872 = vld [vmem:[%s2 + $0x70] sm:$0xff]
        %v873 = vld [vmem:[%s2 + $0x78] sm:$0xff]
        %875 = vset.pattern.permute.xlu0 0
        %876 = vperm.xlu0 %875, %v858
        %v877 = vpop.permute.xlu0 %876
        %880 = vset.pattern.permute.xlu0 0
        %881 = vperm.xlu0 %880, %v859
        %v882 = vpop.permute.xlu0 %881
        %885 = vset.pattern.permute.xlu0 0
        %886 = vperm.xlu0 %885, %v860
        %v887 = vpop.permute.xlu0 %886
        %890 = vset.pattern.permute.xlu0 0
        %891 = vperm.xlu0 %890, %v861
        %v892 = vpop.permute.xlu0 %891
        %895 = vset.pattern.permute.xlu0 0
        %896 = vperm.xlu0 %895, %v862
        %v897 = vpop.permute.xlu0 %896
        %900 = vset.pattern.permute.xlu0 0
        %901 = vperm.xlu0 %900, %v863
        %v902 = vpop.permute.xlu0 %901
        %905 = vset.pattern.permute.xlu0 0
        %906 = vperm.xlu0 %905, %v864
        %v907 = vpop.permute.xlu0 %906
        %910 = vset.pattern.permute.xlu0 0
        %911 = vperm.xlu0 %910, %v865
        %v912 = vpop.permute.xlu0 %911
        %915 = vset.pattern.permute.xlu0 0
        %916 = vperm.xlu0 %915, %v866
        %v917 = vpop.permute.xlu0 %916
        %920 = vset.pattern.permute.xlu0 0
        %921 = vperm.xlu0 %920, %v867
        %v922 = vpop.permute.xlu0 %921
        %925 = vset.pattern.permute.xlu0 0
        %926 = vperm.xlu0 %925, %v868
        %v927 = vpop.permute.xlu0 %926
        %930 = vset.pattern.permute.xlu0 0
        %931 = vperm.xlu0 %930, %v869
        %v932 = vpop.permute.xlu0 %931
        %935 = vset.pattern.permute.xlu0 0
        %936 = vperm.xlu0 %935, %v870
        %v937 = vpop.permute.xlu0 %936
        %940 = vset.pattern.permute.xlu0 0
        %941 = vperm.xlu0 %940, %v871
        %v942 = vpop.permute.xlu0 %941
        %945 = vset.pattern.permute.xlu0 0
        %946 = vperm.xlu0 %945, %v872
        %v947 = vpop.permute.xlu0 %946
        %950 = vset.pattern.permute.xlu0 0
        %951 = vperm.xlu0 %950, %v873
        %v952 = vpop.permute.xlu0 %951
        %v954 = vadd.f32 %v826, %v877
        %v955 = vadd.f32 %v827, %v882
        %v956 = vadd.f32 %v828, %v887
        %v957 = vadd.f32 %v829, %v892
        %v958 = vadd.f32 %v830, %v897
        %v959 = vadd.f32 %v831, %v902
        %v960 = vadd.f32 %v832, %v907
        %v961 = vadd.f32 %v833, %v912
        %v962 = vadd.f32 %v834, %v917
        %v963 = vadd.f32 %v835, %v922
        %v964 = vadd.f32 %v836, %v927
        %v965 = vadd.f32 %v837, %v932
        %v966 = vadd.f32 %v838, %v937
        %v967 = vadd.f32 %v839, %v942
        %v968 = vadd.f32 %v840, %v947
        %v969 = vadd.f32 %v841, %v952
        %v970 = vadd.f32 %v842, %v877
        %v971 = vadd.f32 %v843, %v882
        %v972 = vadd.f32 %v844, %v887
        %v973 = vadd.f32 %v845, %v892
        %v974 = vadd.f32 %v846, %v897
        %v975 = vadd.f32 %v847, %v902
        %v976 = vadd.f32 %v848, %v907
        %v977 = vadd.f32 %v849, %v912
        %v978 = vadd.f32 %v850, %v917
        %v979 = vadd.f32 %v851, %v922
        %v980 = vadd.f32 %v852, %v927
        %v981 = vadd.f32 %v853, %v932
        %v982 = vadd.f32 %v854, %v937
        %v983 = vadd.f32 %v855, %v942
        %v984 = vadd.f32 %v856, %v947
        %v985 = vadd.f32 %v857, %v952
        %v986 = vmax.f32 %v954, 0.0
        %v987 = vmax.f32 %v955, 0.0
        %v988 = vmax.f32 %v956, 0.0
        %v989 = vmax.f32 %v957, 0.0
        %v990 = vmax.f32 %v958, 0.0
        %v991 = vmax.f32 %v959, 0.0
        %v992 = vmax.f32 %v960, 0.0
        %v993 = vmax.f32 %v961, 0.0
        %v994 = vmax.f32 %v962, 0.0
        %v995 = vmax.f32 %v963, 0.0
        %v996 = vmax.f32 %v964, 0.0
        %v997 = vmax.f32 %v965, 0.0
        %v998 = vmax.f32 %v966, 0.0
        %v999 = vmax.f32 %v967, 0.0
        %v1000 = vmax.f32 %v968, 0.0
        %v1001 = vmax.f32 %v969, 0.0
        %v1002 = vmax.f32 %v970, 0.0
        %v1003 = vmax.f32 %v971, 0.0
        %v1004 = vmax.f32 %v972, 0.0
        %v1005 = vmax.f32 %v973, 0.0
        %v1006 = vmax.f32 %v974, 0.0
        %v1007 = vmax.f32 %v975, 0.0
        %v1008 = vmax.f32 %v976, 0.0
        %v1009 = vmax.f32 %v977, 0.0
        %v1010 = vmax.f32 %v978, 0.0
        %v1011 = vmax.f32 %v979, 0.0
        %v1012 = vmax.f32 %v980, 0.0
        %v1013 = vmax.f32 %v981, 0.0
        %v1014 = vmax.f32 %v982, 0.0
        %v1015 = vmax.f32 %v983, 0.0
        %v1016 = vmax.f32 %v984, 0.0
        %v1017 = vmax.f32 %v985, 0.0
        %v1018 = vld [vmem:[#allocation2] sm:$0x3]
        %1019 = vadd.xlane.f32.xlu0 %v986
        %v1020 = vpop.xlane.xlu0 %1019
        %1021 = vadd.xlane.f32.xlu0 %v987
        %v1022 = vpop.xlane.xlu0 %1021
        %1023 = vadd.xlane.f32.xlu0 %v988
        %v1024 = vpop.xlane.xlu0 %1023
        %1025 = vadd.xlane.f32.xlu0 %v989
        %v1026 = vpop.xlane.xlu0 %1025
        %1027 = vadd.xlane.f32.xlu0 %v990
        %v1028 = vpop.xlane.xlu0 %1027
        %1029 = vadd.xlane.f32.xlu0 %v991
        %v1030 = vpop.xlane.xlu0 %1029
        %1031 = vadd.xlane.f32.xlu0 %v992
        %v1032 = vpop.xlane.xlu0 %1031
        %1033 = vadd.xlane.f32.xlu0 %v993
        %v1034 = vpop.xlane.xlu0 %1033
        %1035 = vadd.xlane.f32.xlu0 %v994
        %v1036 = vpop.xlane.xlu0 %1035
        %1037 = vadd.xlane.f32.xlu0 %v995
        %v1038 = vpop.xlane.xlu0 %1037
        %1039 = vadd.xlane.f32.xlu0 %v996
        %v1040 = vpop.xlane.xlu0 %1039
        %1041 = vadd.xlane.f32.xlu0 %v997
        %v1042 = vpop.xlane.xlu0 %1041
        %1043 = vadd.xlane.f32.xlu0 %v998
        %v1044 = vpop.xlane.xlu0 %1043
        %1045 = vadd.xlane.f32.xlu0 %v999
        %v1046 = vpop.xlane.xlu0 %1045
        %1047 = vadd.xlane.f32.xlu0 %v1000
        %v1048 = vpop.xlane.xlu0 %1047
        %1049 = vadd.xlane.f32.xlu0 %v1001
        %v1050 = vpop.xlane.xlu0 %1049
        %1051 = vadd.xlane.f32.xlu0 %v1002
        %v1052 = vpop.xlane.xlu0 %1051
        %1053 = vadd.xlane.f32.xlu0 %v1003
        %v1054 = vpop.xlane.xlu0 %1053
        %1055 = vadd.xlane.f32.xlu0 %v1004
        %v1056 = vpop.xlane.xlu0 %1055
        %1057 = vadd.xlane.f32.xlu0 %v1005
        %v1058 = vpop.xlane.xlu0 %1057
        %1059 = vadd.xlane.f32.xlu0 %v1006
        %v1060 = vpop.xlane.xlu0 %1059
        %1061 = vadd.xlane.f32.xlu0 %v1007
        %v1062 = vpop.xlane.xlu0 %1061
        %1063 = vadd.xlane.f32.xlu0 %v1008
        %v1064 = vpop.xlane.xlu0 %1063
        %1065 = vadd.xlane.f32.xlu0 %v1009
        %v1066 = vpop.xlane.xlu0 %1065
        %1067 = vadd.xlane.f32.xlu0 %v1010
        %v1068 = vpop.xlane.xlu0 %1067
        %1069 = vadd.xlane.f32.xlu0 %v1011
        %v1070 = vpop.xlane.xlu0 %1069
        %1071 = vadd.xlane.f32.xlu0 %v1012
        %v1072 = vpop.xlane.xlu0 %1071
        %1073 = vadd.xlane.f32.xlu0 %v1013
        %v1074 = vpop.xlane.xlu0 %1073
        %1075 = vadd.xlane.f32.xlu0 %v1014
        %v1076 = vpop.xlane.xlu0 %1075
        %1077 = vadd.xlane.f32.xlu0 %v1015
        %v1078 = vpop.xlane.xlu0 %1077
        %1079 = vadd.xlane.f32.xlu0 %v1016
        %v1080 = vpop.xlane.xlu0 %1079
        %1081 = vadd.xlane.f32.xlu0 %v1017
        %v1082 = vpop.xlane.xlu0 %1081
        %v1115 = vlaneseq
        %v1116 = vand.u32 %v1115, 127
        %v1117 = vlaneseq
        %v1118 = vshrl.u32 %v1117, 7
        %v1119 = vsub.s32 %v1116, %v1118
        %v1120 = vrot.slane %v1020, %v1119
        %v1121 = vadd.s32 %v1116, 4294967288
        %v1122 = vlaneseq
        %v1123 = vshrl.u32 %v1122, 7
        %v1124 = vsub.s32 %v1121, %v1123
        %v1125 = vrot.slane %v1022, %v1124
        %vm1126 = vcmask 130112
        %v1127 = vsel %vm1126, %v1125, %v1120
        %v1128 = vadd.s32 %v1116, 4294967280
        %v1129 = vlaneseq
        %v1130 = vshrl.u32 %v1129, 7
        %v1131 = vsub.s32 %v1128, %v1130
        %v1132 = vrot.slane %v1024, %v1131
        %vm1133 = vcmask 195712
        %v1134 = vsel %vm1133, %v1132, %v1127
        %v1135 = vadd.s32 %v1116, 4294967272
        %v1136 = vlaneseq
        %v1137 = vshrl.u32 %v1136, 7
        %v1138 = vsub.s32 %v1135, %v1137
        %v1139 = vrot.slane %v1026, %v1138
        %vm1140 = vcmask 261312
        %v1141 = vsel %vm1140, %v1139, %v1134
        %v1142 = vadd.s32 %v1116, 4294967264
        %v1143 = vlaneseq
        %v1144 = vshrl.u32 %v1143, 7
        %v1145 = vsub.s32 %v1142, %v1144
        %v1146 = vrot.slane %v1028, %v1145
        %vm1147 = vcmask 326912
        %v1148 = vsel %vm1147, %v1146, %v1141
        %v1149 = vadd.s32 %v1116, 4294967256
        %v1150 = vlaneseq
        %v1151 = vshrl.u32 %v1150, 7
        %v1152 = vsub.s32 %v1149, %v1151
        %v1153 = vrot.slane %v1030, %v1152
        %vm1154 = vcmask 392512
        %v1155 = vsel %vm1154, %v1153, %v1148
        %v1156 = vadd.s32 %v1116, 4294967248
        %v1157 = vlaneseq
        %v1158 = vshrl.u32 %v1157, 7
        %v1159 = vsub.s32 %v1156, %v1158
        %v1160 = vrot.slane %v1032, %v1159
        %vm1161 = vcmask 458112
        %v1162 = vsel %vm1161, %v1160, %v1155
        %v1163 = vadd.s32 %v1116, 4294967240
        %v1164 = vlaneseq
        %v1165 = vshrl.u32 %v1164, 7
        %v1166 = vsub.s32 %v1163, %v1165
        %v1167 = vrot.slane %v1034, %v1166
        %vm1168 = vcmask 523712
        %v1169 = vsel %vm1168, %v1167, %v1162
        %v1170 = vadd.s32 %v1116, 4294967232
        %v1171 = vlaneseq
        %v1172 = vshrl.u32 %v1171, 7
        %v1173 = vsub.s32 %v1170, %v1172
        %v1174 = vrot.slane %v1036, %v1173
        %vm1175 = vcmask 589312
        %v1176 = vsel %vm1175, %v1174, %v1169
        %v1177 = vadd.s32 %v1116, 4294967224
        %v1178 = vlaneseq
        %v1179 = vshrl.u32 %v1178, 7
        %v1180 = vsub.s32 %v1177, %v1179
        %v1181 = vrot.slane %v1038, %v1180
        %vm1182 = vcmask 654912
        %v1183 = vsel %vm1182, %v1181, %v1176
        %v1184 = vadd.s32 %v1116, 4294967216
        %v1185 = vlaneseq
        %v1186 = vshrl.u32 %v1185, 7
        %v1187 = vsub.s32 %v1184, %v1186
        %v1188 = vrot.slane %v1040, %v1187
        %vm1189 = vcmask 720512
        %v1190 = vsel %vm1189, %v1188, %v1183
        %v1191 = vadd.s32 %v1116, 4294967208
        %v1192 = vlaneseq
        %v1193 = vshrl.u32 %v1192, 7
        %v1194 = vsub.s32 %v1191, %v1193
        %v1195 = vrot.slane %v1042, %v1194
        %vm1196 = vcmask 786112
        %v1197 = vsel %vm1196, %v1195, %v1190
        %v1198 = vadd.s32 %v1116, 4294967200
        %v1199 = vlaneseq
        %v1200 = vshrl.u32 %v1199, 7
        %v1201 = vsub.s32 %v1198, %v1200
        %v1202 = vrot.slane %v1044, %v1201
        %vm1203 = vcmask 851712
        %v1204 = vsel %vm1203, %v1202, %v1197
        %v1205 = vadd.s32 %v1116, 4294967192
        %v1206 = vlaneseq
        %v1207 = vshrl.u32 %v1206, 7
        %v1208 = vsub.s32 %v1205, %v1207
        %v1209 = vrot.slane %v1046, %v1208
        %vm1210 = vcmask 917312
        %v1211 = vsel %vm1210, %v1209, %v1204
        %v1212 = vadd.s32 %v1116, 4294967184
        %v1213 = vlaneseq
        %v1214 = vshrl.u32 %v1213, 7
        %v1215 = vsub.s32 %v1212, %v1214
        %v1216 = vrot.slane %v1048, %v1215
        %vm1217 = vcmask 982912
        %v1218 = vsel %vm1217, %v1216, %v1211
        %v1219 = vadd.s32 %v1116, 4294967176
        %v1220 = vlaneseq
        %v1221 = vshrl.u32 %v1220, 7
        %v1222 = vsub.s32 %v1219, %v1221
        %v1223 = vrot.slane %v1050, %v1222
        %vm1224 = vcmask 1048512
        %v1225 = vsel %vm1224, %v1223, %v1218
        %v1226 = vlaneseq
        %v1227 = vshrl.u32 %v1226, 7
        %v1228 = vsub.s32 %v1116, %v1227
        %v1229 = vrot.slane %v1052, %v1228
        %v1230 = vlaneseq
        %v1231 = vshrl.u32 %v1230, 7
        %v1232 = vsub.s32 %v1121, %v1231
        %v1233 = vrot.slane %v1054, %v1232
        %v1234 = vsel %vm1126, %v1233, %v1229
        %v1235 = vlaneseq
        %v1236 = vshrl.u32 %v1235, 7
        %v1237 = vsub.s32 %v1128, %v1236
        %v1238 = vrot.slane %v1056, %v1237
        %v1239 = vsel %vm1133, %v1238, %v1234
        %v1240 = vlaneseq
        %v1241 = vshrl.u32 %v1240, 7
        %v1242 = vsub.s32 %v1135, %v1241
        %v1243 = vrot.slane %v1058, %v1242
        %v1244 = vsel %vm1140, %v1243, %v1239
        %v1245 = vlaneseq
        %v1246 = vshrl.u32 %v1245, 7
        %v1247 = vsub.s32 %v1142, %v1246
        %v1248 = vrot.slane %v1060, %v1247
        %v1249 = vsel %vm1147, %v1248, %v1244
        %v1250 = vlaneseq
        %v1251 = vshrl.u32 %v1250, 7
        %v1252 = vsub.s32 %v1149, %v1251
        %v1253 = vrot.slane %v1062, %v1252
        %v1254 = vsel %vm1154, %v1253, %v1249
        %v1255 = vlaneseq
        %v1256 = vshrl.u32 %v1255, 7
        %v1257 = vsub.s32 %v1156, %v1256
        %v1258 = vrot.slane %v1064, %v1257
        %v1259 = vsel %vm1161, %v1258, %v1254
        %v1260 = vlaneseq
        %v1261 = vshrl.u32 %v1260, 7
        %v1262 = vsub.s32 %v1163, %v1261
        %v1263 = vrot.slane %v1066, %v1262
        %v1264 = vsel %vm1168, %v1263, %v1259
        %v1265 = vlaneseq
        %v1266 = vshrl.u32 %v1265, 7
        %v1267 = vsub.s32 %v1170, %v1266
        %v1268 = vrot.slane %v1068, %v1267
        %v1269 = vsel %vm1175, %v1268, %v1264
        %v1270 = vlaneseq
        %v1271 = vshrl.u32 %v1270, 7
        %v1272 = vsub.s32 %v1177, %v1271
        %v1273 = vrot.slane %v1070, %v1272
        %v1274 = vsel %vm1182, %v1273, %v1269
        %v1275 = vlaneseq
        %v1276 = vshrl.u32 %v1275, 7
        %v1277 = vsub.s32 %v1184, %v1276
        %v1278 = vrot.slane %v1072, %v1277
        %v1279 = vsel %vm1189, %v1278, %v1274
        %v1280 = vlaneseq
        %v1281 = vshrl.u32 %v1280, 7
        %v1282 = vsub.s32 %v1191, %v1281
        %v1283 = vrot.slane %v1074, %v1282
        %v1284 = vsel %vm1196, %v1283, %v1279
        %v1285 = vlaneseq
        %v1286 = vshrl.u32 %v1285, 7
        %v1287 = vsub.s32 %v1198, %v1286
        %v1288 = vrot.slane %v1076, %v1287
        %v1289 = vsel %vm1203, %v1288, %v1284
        %v1290 = vlaneseq
        %v1291 = vshrl.u32 %v1290, 7
        %v1292 = vsub.s32 %v1205, %v1291
        %v1293 = vrot.slane %v1078, %v1292
        %v1294 = vsel %vm1210, %v1293, %v1289
        %v1295 = vlaneseq
        %v1296 = vshrl.u32 %v1295, 7
        %v1297 = vsub.s32 %v1212, %v1296
        %v1298 = vrot.slane %v1080, %v1297
        %v1299 = vsel %vm1217, %v1298, %v1294
        %v1300 = vlaneseq
        %v1301 = vshrl.u32 %v1300, 7
        %v1302 = vsub.s32 %v1219, %v1301
        %v1303 = vrot.slane %v1082, %v1302
        %v1304 = vsel %vm1224, %v1303, %v1299
        %vm1305 = vcmask 1041409
        %v1306 = vsel %vm1305, %v1304, %v1225
        %v1308 = vadd.f32 %v1018, %v1306
        %1309 = vst [vmem:[#allocation2] sm:$0x3] %v1308
        %p1310 = scmp.eq.s32.totalorder %s20, 1
        // Predicated region
        $region87: #{tpu_custom_call.1} parent=77 // pred_check
          %p1311 = pneg %p1310
        $region88: #{tpu_custom_call.1} parent=77 // pred_check_branch
          %1313 = sbr.rel (%p1311) target = $region90
        $region89: #{tpu_custom_call.1} parent=77 // pred_region
          %v1314 = vld [vmem:[#allocation2] sm:$0x3]
          %v1315 = vmul.f32 %v1314, 0.00390625
          %v1316 = vld [vmem:[%s3] sm:$0xff]
          %v1317 = vld [vmem:[%s3 + $0x8] sm:$0xff]
          %v1318 = vld [vmem:[%s3 + $0x10] sm:$0xff]
          %v1319 = vld [vmem:[%s3 + $0x18] sm:$0xff]
          %v1320 = vld [vmem:[%s3 + $0x20] sm:$0xff]
          %v1321 = vld [vmem:[%s3 + $0x28] sm:$0xff]
          %v1322 = vld [vmem:[%s3 + $0x30] sm:$0xff]
          %v1323 = vld [vmem:[%s3 + $0x38] sm:$0xff]
          %v1324 = vld [vmem:[%s3 + $0x40] sm:$0xff]
          %v1325 = vld [vmem:[%s3 + $0x48] sm:$0xff]
          %v1326 = vld [vmem:[%s3 + $0x50] sm:$0xff]
          %v1327 = vld [vmem:[%s3 + $0x58] sm:$0xff]
          %v1328 = vld [vmem:[%s3 + $0x60] sm:$0xff]
          %v1329 = vld [vmem:[%s3 + $0x68] sm:$0xff]
          %v1330 = vld [vmem:[%s3 + $0x70] sm:$0xff]
          %v1331 = vld [vmem:[%s3 + $0x78] sm:$0xff]
          %v1332 = vld [vmem:[%s4] sm:$0x1]
          %v1334 = vlaneseq
          %v1335 = vshrl.u32 %v1334, 7
          %v1336 = vsub.s32 0, %v1335
          %v1337 = vrot.slane %v1332, %v1336
          %1339 = vmatprep.subr.mxu0 0.0
          %1340 = vmatpush1.msra.mxu0 %v1331
          %1341 = vmatprep.subr.mxu0 0.0
          %1342 = vmatpush1.msra.mxu0 %v1330
          %1343 = vmatprep.subr.mxu0 0.0
          %1344 = vmatpush1.msra.mxu0 %v1329
          %1345 = vmatprep.subr.mxu0 0.0
          %1346 = vmatpush1.msra.mxu0 %v1328
          %1347 = vmatprep.subr.mxu0 0.0
          %1348 = vmatpush1.msra.mxu0 %v1327
          %1349 = vmatprep.subr.mxu0 0.0
          %1350 = vmatpush1.msra.mxu0 %v1326
          %1351 = vmatprep.subr.mxu0 0.0
          %1352 = vmatpush1.msra.mxu0 %v1325
          %1353 = vmatprep.subr.mxu0 0.0
          %1354 = vmatpush1.msra.mxu0 %v1324
          %1355 = vmatprep.subr.mxu0 0.0
          %1356 = vmatpush1.msra.mxu0 %v1323
          %1357 = vmatprep.subr.mxu0 0.0
          %1358 = vmatpush1.msra.mxu0 %v1322
          %1359 = vmatprep.subr.mxu0 0.0
          %1360 = vmatpush1.msra.mxu0 %v1321
          %1361 = vmatprep.subr.mxu0 0.0
          %1362 = vmatpush1.msra.mxu0 %v1320
          %1363 = vmatprep.subr.mxu0 0.0
          %1364 = vmatpush1.msra.mxu0 %v1319
          %1365 = vmatprep.subr.mxu0 0.0
          %1366 = vmatpush1.msra.mxu0 %v1318
          %1367 = vmatprep.subr.mxu0 0.0
          %1368 = vmatpush1.msra.mxu0 %v1317
          %1369 = vmatprep.subr.mxu0 0.0
          %1370 = vmatpush1.msra.mxu0 %v1316
          %1371 = vmatprep.subr.mxu0 0.0
          %1372 = vmatpush2.msra.mxu0 0.0
          %1373 = vmatprep.subr.mxu0 0.0
          %1374 = vmatpush2.msra.mxu0 0.0
          %1375 = vmatprep.subr.mxu0 0.0
          %1376 = vmatpush2.msra.mxu0 0.0
          %1377 = vmatprep.subr.mxu0 0.0
          %1378 = vmatpush2.msra.mxu0 0.0
          %1379 = vmatprep.subr.mxu0 0.0
          %1380 = vmatpush2.msra.mxu0 0.0
          %1381 = vmatprep.subr.mxu0 0.0
          %1382 = vmatpush2.msra.mxu0 0.0
          %1383 = vmatprep.subr.mxu0 0.0
          %1384 = vmatpush2.msra.mxu0 0.0
          %1385 = vmatprep.subr.mxu0 0.0
          %1386 = vmatpush2.msra.mxu0 0.0
          %1387 = vmatprep.subr.mxu0 0.0
          %1388 = vmatpush2.msra.mxu0 0.0
          %1389 = vmatprep.subr.mxu0 0.0
          %1390 = vmatpush2.msra.mxu0 0.0
          %1391 = vmatprep.subr.mxu0 0.0
          %1392 = vmatpush2.msra.mxu0 0.0
          %1393 = vmatprep.subr.mxu0 0.0
          %1394 = vmatpush2.msra.mxu0 0.0
          %1395 = vmatprep.subr.mxu0 0.0
          %1396 = vmatpush2.msra.mxu0 0.0
          %1397 = vmatprep.subr.mxu0 0.0
          %1398 = vmatpush2.msra.mxu0 0.0
          %1399 = vmatprep.subr.mxu0 0.0
          %1400 = vmatpush2.msra.mxu0 0.0
          %1401 = vmatprep.subr.mxu0 0.0
          %1402 = vmatpush2.msra.mxu0 0.0
          %1403 = vmatprep.mubr.f32.mxu0 0.0
          %1404 = vmatmul.mubr.f32.gmra.mxu0 %v1315
          %v1405 = vpop.f32.mrf.mxu0
          %v1406 = vadd.f32 %v1337, %v1405
          %v1407 = vpop.f32.mrf.mxu0
          %1408 = vdwg.mxu0
          %v1409 = vmax.f32 %v1406, 0.0
          %v1410 = vld [vmem:[%s5] sm:$0xff]
          %v1411 = vld [vmem:[%s5 + $0x8] sm:$0xf]
          %v1412 = vld [vmem:[#allocation3] sm:$0x1]
          %v1414 = vlaneseq
          %v1415 = vshrl.u32 %v1414, 7
          %v1416 = vsub.s32 0, %v1415
          %v1417 = vrot.slane %v1412, %v1416
          %vm1419 = vcmask 97280
          %v1421 = vsel %vm1419, %v1409, 0
          %vm1423 = vcmask 1043456
          %v1425 = vsel %vm1423, %v1411, 0
          %1427 = vmatprep.subr.mxu0 0.0
          %1428 = vmatpush1.msra.mxu0 0.0
          %1429 = vmatprep.subr.mxu0 0.0
          %1430 = vmatpush1.msra.mxu0 0.0
          %1431 = vmatprep.subr.mxu0 0.0
          %1432 = vmatpush1.msra.mxu0 0.0
          %1433 = vmatprep.subr.mxu0 0.0
          %1434 = vmatpush1.msra.mxu0 0.0
          %1435 = vmatprep.subr.mxu0 0.0
          %1436 = vmatpush1.msra.mxu0 0.0
          %1437 = vmatprep.subr.mxu0 0.0
          %1438 = vmatpush1.msra.mxu0 0.0
          %1439 = vmatprep.subr.mxu0 0.0
          %1440 = vmatpush1.msra.mxu0 0.0
          %1441 = vmatprep.subr.mxu0 0.0
          %1442 = vmatpush1.msra.mxu0 0.0
          %1443 = vmatprep.subr.mxu0 0.0
          %1444 = vmatpush1.msra.mxu0 0.0
          %1445 = vmatprep.subr.mxu0 0.0
          %1446 = vmatpush1.msra.mxu0 0.0
          %1447 = vmatprep.subr.mxu0 0.0
          %1448 = vmatpush1.msra.mxu0 0.0
          %1449 = vmatprep.subr.mxu0 0.0
          %1450 = vmatpush1.msra.mxu0 0.0
          %1451 = vmatprep.subr.mxu0 0.0
          %1452 = vmatpush1.msra.mxu0 0.0
          %1453 = vmatprep.subr.mxu0 0.0
          %1454 = vmatpush1.msra.mxu0 0.0
          %1455 = vmatprep.subr.mxu0 0.0
          %1456 = vmatpush1.msra.mxu0 %v1425
          %1457 = vmatprep.subr.mxu0 0.0
          %1458 = vmatpush1.msra.mxu0 %v1410
          %1459 = vmatprep.subr.mxu0 0.0
          %1460 = vmatpush2.msra.mxu0 0.0
          %1461 = vmatprep.subr.mxu0 0.0
          %1462 = vmatpush2.msra.mxu0 0.0
          %1463 = vmatprep.subr.mxu0 0.0
          %1464 = vmatpush2.msra.mxu0 0.0
          %1465 = vmatprep.subr.mxu0 0.0
          %1466 = vmatpush2.msra.mxu0 0.0
          %1467 = vmatprep.subr.mxu0 0.0
          %1468 = vmatpush2.msra.mxu0 0.0
          %1469 = vmatprep.subr.mxu0 0.0
          %1470 = vmatpush2.msra.mxu0 0.0
          %1471 = vmatprep.subr.mxu0 0.0
          %1472 = vmatpush2.msra.mxu0 0.0
          %1473 = vmatprep.subr.mxu0 0.0
          %1474 = vmatpush2.msra.mxu0 0.0
          %1475 = vmatprep.subr.mxu0 0.0
          %1476 = vmatpush2.msra.mxu0 0.0
          %1477 = vmatprep.subr.mxu0 0.0
          %1478 = vmatpush2.msra.mxu0 0.0
          %1479 = vmatprep.subr.mxu0 0.0
          %1480 = vmatpush2.msra.mxu0 0.0
          %1481 = vmatprep.subr.mxu0 0.0
          %1482 = vmatpush2.msra.mxu0 0.0
          %1483 = vmatprep.subr.mxu0 0.0
          %1484 = vmatpush2.msra.mxu0 0.0
          %1485 = vmatprep.subr.mxu0 0.0
          %1486 = vmatpush2.msra.mxu0 0.0
          %1487 = vmatprep.subr.mxu0 0.0
          %1488 = vmatpush2.msra.mxu0 0.0
          %1489 = vmatprep.subr.mxu0 0.0
          %1490 = vmatpush2.msra.mxu0 0.0
          %1491 = vmatprep.mubr.f32.mxu0 0.0
          %1492 = vmatmul.mubr.f32.gmra.mxu0 %v1421
          %v1493 = vpop.f32.mrf.mxu0
          %v1494 = vadd.f32 %v1417, %v1493
          %v1495 = vpop.f32.mrf.mxu0
          %1496 = vdwg.mxu0
          %vm1497 = vcmask 1024
          %1498 = vst.msk [vmem:[%s7] sm:$0x3] %vm1497, %v1494
        $region90: #{tpu_custom_call.1} parent=77 // pred_fallthru
          _
        // Predicated region
        $region91: #{tpu_custom_call.1} parent=77 // pred_check
          %p1499 = pneg %p185
        $region92: #{tpu_custom_call.1} parent=77 // pred_check_branch
          %1501 = sbr.rel (%p1499) target = $region94
        $region93: #{tpu_custom_call.1} parent=77 // pred_region
          _
        $region94: #{tpu_custom_call.1} parent=77 // pred_fallthru
          _
        // Predicated region
        $region95: #{tpu_custom_call.1} parent=77 // pred_check
          %p1502 = pneg %p185
        $region96: #{tpu_custom_call.1} parent=77 // pred_check_branch
          %1504 = sbr.rel (%p1502) target = $region98
        $region97: #{tpu_custom_call.1} parent=77 // pred_region
          _
        $region98: #{tpu_custom_call.1} parent=77 // pred_fallthru
          _
      $region78: #{tpu_custom_call.1} parent=5 // pred_fallthru
        _
      %p1505 = scmp.le.s32.totalorder 2, %s15
      // Predicated region
      $region99: #{tpu_custom_call.1} parent=5 // pred_check
        %p1506 = pneg %p1505
      $region100: #{tpu_custom_call.1} parent=5 // pred_check_branch
        %1508 = sbr.rel (%p1506) target = $region102
      $region101: #{tpu_custom_call.1} parent=5 // pred_region
        %s1509 = ssub.s32 %s15, 2
      $region102: #{tpu_custom_call.1} parent=5 // pred_fallthru
        _
    $region6: #{tpu_custom_call.1} parent=1 // loop_footer
      %s19 = sadd.s32 1, %s15
    $region7: #{tpu_custom_call.1} parent=1 // loop_footer_branch
      %14 = sbr.rel target = $region3
    $region8: #{tpu_custom_call.1} parent=1 // loop_exit
      _

</llo_original>
